<compile_context>
chip_gen: v5e
topology: v5e:2x2
jax: 0.10.0
libtpu: 0.0.40
codegen_flags: <defaults>
</compile_context>

<pallas_src>
import math
import numpy as np
import jax
import jax.numpy as jnp
from jax.experimental import pallas as pl
from jax.experimental.pallas import tpu as pltpu


# ----------------------------------------------------------------------------
# helpers
# ----------------------------------------------------------------------------

_VMEM_LIMIT_CACHE = None


def _vmem_limit(frac=0.75, fallback=64 * 1024 * 1024):
    """Per-generation VMEM budget (falls back to 64 MiB if the query fails)."""
    global _VMEM_LIMIT_CACHE
    if _VMEM_LIMIT_CACHE is None:
        limit = fallback
        try:
            cap = getattr(pltpu.get_tpu_info(), "vmem_capacity_bytes", None)
            if cap:
                limit = int(cap * frac)
        except Exception:
            pass
        _VMEM_LIMIT_CACHE = int(min(limit, 128 * 1024 * 1024))
    return _VMEM_LIMIT_CACHE


def _pick_tile(n, target, multiple=1):
    """Largest t <= target with n % t == 0 and t % multiple == 0."""
    t = min(n, max(target, 1))
    while t >= 1:
        if n % t == 0 and t % multiple == 0:
            return t
        t -= 1
    return multiple if (multiple >= 1 and n % multiple == 0) else 1


# ----------------------------------------------------------------------------
# Fused 3x3 conv (+bias, ReLU, optional 2x2 max-pool), bf16 activations
# ----------------------------------------------------------------------------

def conv3x3_bias_relu(x, w, b, *, relu=True, pool=False, row_tile=32,
                      out_dtype=jnp.bfloat16):
    """Same-padding 3x3 conv on NHWC, fused bias + ReLU + optional 2x2/stride-2 pool.

    The halo-padded image lives in a VMEM scratch (filled once per batch element);
    the conv is 9 accumulating MXU matmuls with M = row_tile * W; output is bf16.
      x: (B, H, W, Cin) bf16/f32, w: (3, 3, Cin, Cout), b: (Cout,)
      -> (B, H, W, Cout) or (B, H/2, W/2, Cout) if pool.
    """
    B, H, W, Cin = x.shape
    Cout = w.shape[-1]
    if Cin < 8:                              # give the lane dim a minimum width
        x = jnp.pad(x, ((0, 0), (0, 0), (0, 0), (0, 8 - Cin)))
        w = jnp.pad(w, ((0, 0), (0, 0), (0, 8 - Cin), (0, 0)))
        Cin = 8
    x = x.astype(jnp.bfloat16)
    w9 = w.reshape(9, Cin, Cout).astype(jnp.bfloat16)
    b2 = jnp.asarray(b, jnp.float32).reshape(1, Cout)

    th = _pick_tile(H, row_tile, multiple=2 if pool else 1)
    n_tiles = H // th
    if pool:
        Ho, Wo, tho = H // 2, W // 2, th // 2
    else:
        Ho, Wo, tho = H, W, th

    def kernel(x_ref, w_ref, b_ref, o_ref, xpad_ref):
        i = pl.program_id(1)

        @pl.when(i == 0)                      # (re)build the halo pad per batch elem
        def _():
            xpad_ref[...] = jnp.zeros_like(xpad_ref)
            xpad_ref[1:H + 1, 1:W + 1, :] = x_ref[0]

        slab = xpad_ref[pl.ds(i * th, th + 2), :, :]          # (th+2, W+2, Cin)
        acc = jnp.zeros((th * W, Cout), jnp.float32)
        for dy in range(3):
            for dx in range(3):
                tap = slab[dy:dy + th, dx:dx + W, :].reshape(th * W, Cin)
                acc = acc + jnp.dot(tap, w_ref[dy * 3 + dx],
                                    preferred_element_type=jnp.float32)
        acc = acc + b_ref[...]
        if relu:
            acc = jnp.maximum(acc, 0.0)

        if pool:
            a = acc.reshape(th // 2, 2, W, Cout)
            rmax = jnp.maximum(a[:, 0], a[:, 1])              # rows
            r2 = rmax.reshape(th // 2, W // 2, 2, Cout)
            o_ref[0] = jnp.maximum(r2[:, :, 0], r2[:, :, 1]).astype(out_dtype)
        else:
            o_ref[0] = acc.reshape(th, W, Cout).astype(out_dtype)

    return pl.pallas_call(
        kernel,
        out_shape=jax.ShapeDtypeStruct((B, Ho, Wo, Cout), out_dtype),
        grid=(B, n_tiles),
        in_specs=[
            # whole image of one batch element stays resident across its row tiles
            pl.BlockSpec((1, H, W, Cin), lambda bi, ti: (bi, 0, 0, 0)),
            pl.BlockSpec((9, Cin, Cout), lambda bi, ti: (0, 0, 0)),
            pl.BlockSpec((1, Cout), lambda bi, ti: (0, 0)),
        ],
        out_specs=pl.BlockSpec((1, tho, Wo, Cout), lambda bi, ti: (bi, ti, 0, 0)),
        scratch_shapes=[pltpu.VMEM((H + 2, W + 2, Cin), jnp.bfloat16)],
        compiler_params=pltpu.CompilerParams(
            dimension_semantics=("parallel", "arbitrary"),
            vmem_limit_bytes=_vmem_limit()),
    )(x, w9, b2)


# ----------------------------------------------------------------------------
# Fused SuperPoint heads: convPa/convDa (3x3+ReLU) -> convPb/convDb (1x1)
#                         + channel softmax + coarse-descriptor L2 normalize
# ----------------------------------------------------------------------------

def superpoint_heads(feats, w_heads, b_heads, w_pb, b_pb, w_db, b_db,
                     *, scale, eps=1e-12, row_tile=32):
    """feats: (B, Hc, Wc, C4) bf16.  Returns logits, probability, raw_desc,
    coarse_desc, all NHWC f32 at coarse resolution — computed in one kernel so the
    intermediate cPa/cDa maps never touch HBM."""
    B, Hc, Wc, C4 = feats.shape
    C5 = w_pb.shape[0]
    ND = w_pb.shape[1]          # 65
    D = w_db.shape[1]           # descriptor_dim

    feats = feats.astype(jnp.bfloat16)
    w9 = w_heads.reshape(9, C4, 2 * C5).astype(jnp.bfloat16)
    bh = jnp.asarray(b_heads, jnp.float32).reshape(1, 2 * C5)
    wpb = jnp.asarray(w_pb, jnp.bfloat16)
    bpb = jnp.asarray(b_pb, jnp.float32).reshape(1, ND)
    wdb = jnp.asarray(w_db, jnp.bfloat16)
    bdb = jnp.asarray(b_db, jnp.float32).reshape(1, D)

    th = _pick_tile(Hc, row_tile)
    n_tiles = Hc // th

    def kernel(x_ref, w_ref, bh_ref, wpb_ref, bpb_ref, wdb_ref, bdb_ref,
               lg_ref, pr_ref, rd_ref, cd_ref, xpad_ref):
        i = pl.program_id(1)

        @pl.when(i == 0)
        def _():
            xpad_ref[...] = jnp.zeros_like(xpad_ref)
            xpad_ref[1:Hc + 1, 1:Wc + 1, :] = x_ref[0]

        slab = xpad_ref[pl.ds(i * th, th + 2), :, :]           # (th+2, Wc+2, C4)
        acc = jnp.zeros((th * Wc, 2 * C5), jnp.float32)
        for dy in range(3):
            for dx in range(3):
                tap = slab[dy:dy + th, dx:dx + Wc, :].reshape(th * Wc, C4)
                acc = acc + jnp.dot(tap, w_ref[dy * 3 + dx],
                                    preferred_element_type=jnp.float32)
        acc = jnp.maximum(acc + bh_ref[...], 0.0)
        heads = acc.astype(jnp.bfloat16)
        pa, da = heads[:, :C5], heads[:, C5:]

        # detector 1x1 head + channel softmax (65 channels)
        logits = jnp.dot(pa, wpb_ref[...],
                         preferred_element_type=jnp.float32) + bpb_ref[...]
        m = jnp.max(logits, axis=-1, keepdims=True)
        e = jnp.exp(logits - m)
        prob = e * pl.reciprocal(jnp.sum(e, axis=-1, keepdims=True), approx=True)

        # descriptor 1x1 head + L2 normalize (coarse descriptors)
        raw = jnp.dot(da, wdb_ref[...],
                      preferred_element_type=jnp.float32) + bdb_ref[...]
        nrm = jnp.sqrt(jnp.sum(raw * raw, axis=-1, keepdims=True))
        coarse = raw * (scale * pl.reciprocal(jnp.maximum(nrm, eps), approx=True))

        lg_ref[0] = logits.reshape(th, Wc, ND)
        pr_ref[0] = prob.reshape(th, Wc, ND)
        rd_ref[0] = raw.reshape(th, Wc, D)
        cd_ref[0] = coarse.reshape(th, Wc, D)

    out_shapes = (
        jax.ShapeDtypeStruct((B, Hc, Wc, ND), jnp.float32),
        jax.ShapeDtypeStruct((B, Hc, Wc, ND), jnp.float32),
        jax.ShapeDtypeStruct((B, Hc, Wc, D), jnp.float32),
        jax.ShapeDtypeStruct((B, Hc, Wc, D), jnp.float32),
    )
    out_specs = (
        pl.BlockSpec((1, th, Wc, ND), lambda bi, ti: (bi, ti, 0, 0)),
        pl.BlockSpec((1, th, Wc, ND), lambda bi, ti: (bi, ti, 0, 0)),
        pl.BlockSpec((1, th, Wc, D), lambda bi, ti: (bi, ti, 0, 0)),
        pl.BlockSpec((1, th, Wc, D), lambda bi, ti: (bi, ti, 0, 0)),
    )

    return pl.pallas_call(
        kernel,
        out_shape=out_shapes,
        grid=(B, n_tiles),
        in_specs=[
            pl.BlockSpec((1, Hc, Wc, C4), lambda bi, ti: (bi, 0, 0, 0)),
            pl.BlockSpec((9, C4, 2 * C5), lambda bi, ti: (0, 0, 0)),
            pl.BlockSpec((1, 2 * C5), lambda bi, ti: (0, 0)),
            pl.BlockSpec((C5, ND), lambda bi, ti: (0, 0)),
            pl.BlockSpec((1, ND), lambda bi, ti: (0, 0)),
            pl.BlockSpec((C5, D), lambda bi, ti: (0, 0)),
            pl.BlockSpec((1, D), lambda bi, ti: (0, 0)),
        ],
        out_specs=out_specs,
        scratch_shapes=[pltpu.VMEM((Hc + 2, Wc + 2, C4), jnp.bfloat16)],
        compiler_params=pltpu.CompilerParams(
            dimension_semantics=("parallel", "arbitrary"),
            vmem_limit_bytes=_vmem_limit()),
    )(feats, w9, bh, wpb, bpb, wdb, bdb)


# ----------------------------------------------------------------------------
# Fused simple_nms: all 5 separable window-max passes + suppression in one kernel
# ----------------------------------------------------------------------------

def simple_nms(scores, radius):
    """SuperPoint simple_nms on (B, H, W) non-negative scores, one kernel per
    batch element; the score map and all intermediates stay in VMEM."""
    B, H, W = scores.shape
    r = int(radius)
    Hp, Wp = H + 2 * r, W + 2 * r

    def kernel(s_ref, o_ref, pad_ref):
        pad_ref[...] = jnp.zeros_like(pad_ref)          # zero halo (scores >= 0)

        def wmax(v):                                    # separable (2r+1)^2 max
            pad_ref[r:r + H, r:r + W] = v
            p = pad_ref[...]
            m = p[:, 0:W]
            for dx in range(1, 2 * r + 1):
                m = jnp.maximum(m, p[:, dx:dx + W])
            out = m[0:H, :]
            for dy in range(1, 2 * r + 1):
                out = jnp.maximum(out, m[dy:dy + H, :])
            return out

        s = s_ref[0]
        max_mask = s == wmax(s)
        for _ in range(2):
            supp_mask = wmax(max_mask.astype(jnp.float32)) > 0.0
            supp_scores = jnp.where(supp_mask, 0.0, s)
            new_max = supp_scores == wmax(supp_scores)
            max_mask = max_mask | (new_max & jnp.logical_not(supp_mask))
        o_ref[0] = jnp.where(max_mask, s, 0.0)

    return pl.pallas_call(
        kernel,
        out_shape=jax.ShapeDtypeStruct((B, H, W), jnp.float32),
        grid=(B,),
        in_specs=[pl.BlockSpec((1, H, W), lambda bi: (bi, 0, 0))],
        out_specs=pl.BlockSpec((1, H, W), lambda bi: (bi, 0, 0)),
        scratch_shapes=[pltpu.VMEM((Hp, Wp), jnp.float32)],
        compiler_params=pltpu.CompilerParams(
            dimension_semantics=("parallel",),
            vmem_limit_bytes=_vmem_limit()),
    )(scores.astype(jnp.float32))


# ----------------------------------------------------------------------------
# Fused bilinear x8 upsample + dense L2 normalize (outputs NCHW, W lane-dense)
# ----------------------------------------------------------------------------

def bilinear_matrix(out_size, in_size):
    """Interpolation matrix for bilinear upsample (align_corners=False)."""
    i = np.arange(out_size)
    src = (i + 0.5) * in_size / out_size - 0.5
    src = np.clip(src, 0.0, in_size - 1.0)
    lo = np.floor(src).astype(np.int64)
    hi = np.minimum(lo + 1, in_size - 1)
    w_hi = (src - lo).astype(np.float32)
    w_lo = 1.0 - w_hi
    M = np.zeros((out_size, in_size), np.float32)
    M[np.arange(out_size), lo] += w_lo
    M[np.arange(out_size), hi] += w_hi
    return jnp.asarray(M)


def upsample8x_l2norm(raw_nchw, H, W, *, scale, eps=1e-12, row_tile=32):
    """raw_nchw: (B, D, Hc, Wc) coarse descriptors -> (B, D, H, W) f32 bilinearly
    upsampled and L2-normalized over D (fused, no HBM intermediates)."""
    B, D, Hc, Wc = raw_nchw.shape
    raw = raw_nchw.astype(jnp.bfloat16)
    Uh = bilinear_matrix(H, Hc).astype(jnp.bfloat16)    # (H, Hc)
    Uw = bilinear_matrix(W, Wc).astype(jnp.bfloat16)    # (W, Wc)

    th = _pick_tile(H, row_tile, multiple=8 if H % 8 == 0 else 1)
    n_tiles = H // th

    def kernel(uh_ref, uw_ref, x_ref, o_ref):
        v = x_ref[0]                                     # (D, Hc, Wc) bf16
        uh_b = jnp.broadcast_to(uh_ref[...][None], (D, th, Hc))
        t1 = jnp.einsum('dyi,diw->dyw', uh_b, v,
                        preferred_element_type=jnp.float32)          # (D, th, Wc)
        uw_b = jnp.broadcast_to(uw_ref[...][None], (D, W, Wc))
        t2 = jnp.einsum('dyj,dxj->dyx', t1.astype(jnp.bfloat16), uw_b,
                        preferred_element_type=jnp.float32)          # (D, th, W)
        nrm = jnp.sqrt(jnp.sum(t2 * t2, axis=0, keepdims=True))      # (1, th, W)
        o_ref[0] = t2 * (scale * pl.reciprocal(jnp.maximum(nrm, eps), approx=True))

    return pl.pallas_call(
        kernel,
        out_shape=jax.ShapeDtypeStruct((B, D, H, W), jnp.float32),
        grid=(B, n_tiles),
        in_specs=[
            pl.BlockSpec((th, Hc), lambda bi, ti: (ti, 0)),
            pl.BlockSpec((W, Wc), lambda bi, ti: (0, 0)),
            pl.BlockSpec((1, D, Hc, Wc), lambda bi, ti: (bi, 0, 0, 0)),
        ],
        out_specs=pl.BlockSpec((1, D, th, W), lambda bi, ti: (bi, 0, ti, 0)),
        compiler_params=pltpu.CompilerParams(
            dimension_semantics=("parallel", "parallel"),
            vmem_limit_bytes=_vmem_limit()),
    )(Uh, Uw, raw)


# ----------------------------------------------------------------------------
# Parameters (deterministic synthetic init) and forward pass
# ----------------------------------------------------------------------------

def conv_param(key, K, cin, cout):
    kw, kb = jax.random.split(key)
    w = jax.random.normal(kw, (K, K, cin, cout), jnp.float32) / math.sqrt(K * K * cin)
    b = 0.01 * jax.random.normal(kb, (cout,), jnp.float32)
    return w, b


def init_superpoint_params(key, in_ch, descriptor_dim):
    c1, c2, c3, c4, c5 = 8, 16, 16, 32, 32
    specs = [
        ("conv1a", 3, in_ch, c1), ("conv1b", 3, c1, c1),
        ("conv2a", 3, c1, c2), ("conv2b", 3, c2, c2),
        ("conv3a", 3, c2, c3), ("conv3b", 3, c3, c3),
        ("conv4a", 3, c3, c4), ("conv4b", 3, c4, c4),
        ("convPa", 3, c4, c5), ("convPb", 1, c5, 65),
        ("convDa", 3, c4, c5), ("convDb", 1, c5, descriptor_dim),
    ]
    keys = jax.random.split(key, len(specs))
    params = {}
    for k, (name, K, ci, co) in zip(keys, specs):
        params[name] = conv_param(k, K, ci, co)
    return params


def image_keypoints_extractor_forward(
    image_nchw, params, *, descriptor_dim=32, nms_radius=2,
    detection_threshold=0.005, detection_top_k=4, remove_borders=4,
    descriptor_scale_factor=1.41,
):
    assert image_nchw.ndim == 4, "Expected 4D tensor [B,C,H,W]."
    B, C, H, W = image_nchw.shape
    assert H % 8 == 0 and W % 8 == 0, "SuperPoint expects H, W multiples of 8."
    x = jnp.transpose(image_nchw, (0, 2, 3, 1)).astype(jnp.bfloat16)   # NCHW -> NHWC

    def cr(name, h, pool=False):
        w, b = params[name]
        return conv3x3_bias_relu(h, w, b, relu=True, pool=pool)

    # VGG-style backbone (3 fused conv+pool stages -> H/8), bf16 activations
    h = cr("conv1a", x); h = cr("conv1b", h, pool=True)
    h = cr("conv2a", h); h = cr("conv2b", h, pool=True)
    h = cr("conv3a", h); h = cr("conv3b", h, pool=True)
    h = cr("conv4a", h); h = cr("conv4b", h)
    backbone_feats = h                                                 # (B, Hc, Wc, c4) bf16
    Hc, Wc = backbone_feats.shape[1], backbone_feats.shape[2]

    # One fused kernel: convPa/convDa + ReLU + convPb/convDb + softmax / L2 norm.
    wPa, bPa = params["convPa"]
    wDa, bDa = params["convDa"]
    c5 = wPa.shape[-1]
    w_heads = jnp.concatenate([wPa, wDa], axis=-1)
    b_heads = jnp.concatenate([bPa, bDa], axis=0)
    wPb, bPb = params["convPb"]
    wDb, bDb = params["convDb"]
    logits, probability, raw_desc, coarse_desc = superpoint_heads(
        backbone_feats, w_heads, b_heads,
        wPb.reshape(c5, 65), bPb, wDb.reshape(c5, descriptor_dim), bDb,
        scale=descriptor_scale_factor)

    # Score: drop dustbin, pixel-shuffle to full resolution [B,1,H,W]
    nodust = probability[..., :64].reshape(B, Hc, Wc, 8, 8)
    score_map = nodust.transpose(0, 1, 3, 2, 4).reshape(B, H, W)
    score = score_map[:, None, :, :]

    # NMS (single fused Pallas kernel per batch element)
    nms = simple_nms(score_map, nms_radius)                            # [B, H, W]

    # Dense descriptors: fused bilinear x8 upsample + L2 normalize, NCHW output.
    raw_nchw = jnp.transpose(raw_desc, (0, 3, 1, 2))                   # [B, D, Hc, Wc]
    norm_nchw = upsample8x_l2norm(raw_nchw, H, W,
                                  scale=descriptor_scale_factor)       # [B, D, H, W]
    # TODO(synk): emit the NHWC layout as a second kernel output to avoid this transpose.
    dense_descriptors = jnp.transpose(norm_nchw, (0, 2, 3, 1)).reshape(
        B, H * W, descriptor_dim)

    # Dense positions: (x, y, score) for every pixel
    ys, xs = jnp.meshgrid(jnp.arange(H, dtype=jnp.float32),
                          jnp.arange(W, dtype=jnp.float32), indexing="ij")
    grid_xy = jnp.stack([xs, ys], -1).reshape(1, H * W, 2)
    dense_positions = jnp.concatenate(
        [jnp.broadcast_to(grid_xy, (B, H * W, 2)), score_map.reshape(B, H * W, 1)], -1)

    # Sparse keypoints: border removal + detection threshold + fixed top-k.
    # TODO(synk): the reference module returns ragged per-image keypoint lists;
    # a fixed top-k with below-threshold scores zeroed is the fixed-shape proxy.
    rb = remove_borders
    border_mask = jnp.zeros((H, W), bool).at[rb:H - rb, rb:W - rb].set(True)
    nms_masked = jnp.where(border_mask[None], nms, 0.0)
    nms_masked = jnp.where(nms_masked >= detection_threshold, nms_masked, 0.0)
    top_vals, top_idx = jax.lax.top_k(nms_masked.reshape(B, -1), detection_top_k)
    sp_x = (top_idx % W).astype(jnp.float32)
    sp_y = (top_idx // W).astype(jnp.float32)
    sparse_positions = jnp.stack([sp_x, sp_y, top_vals], axis=-1)       # [B, K, 3]
    sparse_descriptors = jnp.take_along_axis(
        dense_descriptors, top_idx[:, :, None], axis=1)                 # [B, K, D]

    # Convert small coarse maps to the module's NCHW convention
    to_nchw = lambda t: jnp.transpose(t, (0, 3, 1, 2))
    return {
        "image_size": (H, W),
        "backbone_feats": to_nchw(backbone_feats.astype(jnp.float32)),
        "logits": to_nchw(logits),
        "raw_descriptors": raw_nchw,
        "probability": to_nchw(probability),
        "score": score,
        "nms": nms,
        "coarse_descriptors": to_nchw(coarse_desc),
        "normalized_descriptors": norm_nchw,
        "dense_descriptors": dense_descriptors,
        "sparse_descriptors": sparse_descriptors,
        "sparse_positions": sparse_positions,
        "dense_positions": dense_positions,
    }


# ----------------------------------------------------------------------------
# Example run
# ----------------------------------------------------------------------------

if __name__ == "__main__":
    key = jax.random.PRNGKey(0)
    k_img, k_par = jax.random.split(key)

    B, C, H, W = 2, 1, 16, 16                 # grayscale image, H/8 = 2
    descriptor_dim = 32
    image = jax.random.uniform(k_img, (B, C, H, W), jnp.float32)

    params = init_superpoint_params(k_par, C, descriptor_dim)

    feats = image_keypoints_extractor_forward(
        image, params,
        descriptor_dim=descriptor_dim, nms_radius=2,
        detection_threshold=0.005, detection_top_k=4,
        remove_borders=4, descriptor_scale_factor=1.41,
    )
    feats = jax.block_until_ready(feats)

    # light sanity checks on shapes / values
    assert feats["backbone_feats"].shape == (B, 32, H // 8, W // 8)
    assert feats["logits"].shape == (B, 65, H // 8, W // 8)
    assert feats["probability"].shape == (B, 65, H // 8, W // 8)
    assert feats["score"].shape == (B, 1, H, W)
    assert feats["nms"].shape == (B, H, W)
    assert feats["coarse_descriptors"].shape == (B, descriptor_dim, H // 8, W // 8)
    assert feats["normalized_descriptors"].shape == (B, descriptor_dim, H, W)
    assert feats["dense_descriptors"].shape == (B, H * W, descriptor_dim)
    assert feats["dense_positions"].shape == (B, H * W, 3)
    assert feats["sparse_positions"].shape == (B, 4, 3)
    assert feats["sparse_descriptors"].shape == (B, 4, descriptor_dim)
    assert bool(jnp.all(jnp.isfinite(feats["normalized_descriptors"])))
    print("KERNEL_OK")
</pallas_src>

<mosaic_0001>
module attributes {stable_mosaic.version = 11 : i64} {
  func.func @kernel(%arg0: i32, %arg1: i32, %arg2: memref<1x16x16x8xbf16, #tpu.memory_space<vmem>>, %arg3: memref<9x8x8xbf16, #tpu.memory_space<vmem>>, %arg4: memref<1x8xf32, #tpu.memory_space<vmem>>, %arg5: memref<1x16x16x8xbf16, #tpu.memory_space<vmem>>, %arg6: memref<18x18x8xbf16, #tpu.memory_space<vmem>>) attributes {dimension_semantics = [#tpu.dimension_semantics<parallel>, #tpu.dimension_semantics<arbitrary>], iteration_bounds = array<i64: 2, 1>, scalar_prefetch = 0 : i64, scratch_operands = 1 : i64, tpu.core_type = #tpu.core_type<tc>, window_params = [{transform_indices = @transform_0, window_bounds = array<i64: 1, 16, 16, 8>}, {pipeline_mode = #tpu.pipeline_mode<synchronous>, transform_indices = @transform_1, window_bounds = array<i64: 9, 8, 8>}, {pipeline_mode = #tpu.pipeline_mode<synchronous>, transform_indices = @transform_2, window_bounds = array<i64: 1, 8>}, {transform_indices = @transform_3, window_bounds = array<i64: 1, 16, 16, 8>}]} {
    %c0_i32 = arith.constant 0 : i32
    %0 = arith.cmpi eq, %arg1, %c0_i32 : i32
    %1 = arith.extui %0 : i1 to i32
    %c0_i32_0 = arith.constant 0 : i32
    %2 = arith.cmpi ne, %1, %c0_i32_0 : i32
    scf.if %2 {
      %cst_37 = arith.constant 0.000000e+00 : bf16
      %71 = vector.broadcast %cst_37 : bf16 to vector<18x18x8xbf16>
      %c0_38 = arith.constant 0 : index
      %c0_39 = arith.constant 0 : index
      %c0_40 = arith.constant 0 : index
      %72 = vector.load %arg6[%c0_38, %c0_39, %c0_40] : memref<18x18x8xbf16, #tpu.memory_space<vmem>>, vector<18x18x8xbf16>
      tpu.vector_store %arg6[%c0_38, %c0_39, %c0_40], %71 {strides = array<i32>} : memref<18x18x8xbf16, #tpu.memory_space<vmem>>, vector<18x18x8xbf16>,
      %c0_41 = arith.constant 0 : index
      %c0_42 = arith.constant 0 : index
      %c0_43 = arith.constant 0 : index
      %c0_44 = arith.constant 0 : index
      %73 = vector.load %arg2[%c0_41, %c0_42, %c0_43, %c0_44] : memref<1x16x16x8xbf16, #tpu.memory_space<vmem>>, vector<1x16x16x8xbf16>
      %74 = vector.shape_cast %73 : vector<1x16x16x8xbf16> to vector<16x16x8xbf16>
      %c1_45 = arith.constant 1 : index
      %c1_46 = arith.constant 1 : index
      %c0_47 = arith.constant 0 : index
      %75 = vector.load %arg6[%c1_45, %c1_46, %c0_47] : memref<18x18x8xbf16, #tpu.memory_space<vmem>>, vector<16x16x8xbf16>
      tpu.vector_store %arg6[%c1_45, %c1_46, %c0_47], %74 {strides = array<i32>} : memref<18x18x8xbf16, #tpu.memory_space<vmem>>, vector<16x16x8xbf16>,
    } else {
    }
    %c16_i32 = arith.constant 16 : i32
    %3 = arith.muli %arg1, %c16_i32 : i32
    %4 = arith.index_cast %3 : i32 to index
    %c0 = arith.constant 0 : index
    %c0_1 = arith.constant 0 : index
    %5 = vector.load %arg6[%4, %c0, %c0_1] : memref<18x18x8xbf16, #tpu.memory_space<vmem>>, vector<18x18x8xbf16>
    %cst = arith.constant 0.000000e+00 : f32
    %6 = vector.broadcast %cst : f32 to vector<256x8xf32>
    %7 = vector.extract_strided_slice %5 {offsets = [0, 0, 0], sizes = [16, 16, 8], strides = [1, 1, 1]} : vector<18x18x8xbf16> to vector<16x16x8xbf16>
    %8 = vector.shape_cast %7 : vector<16x16x8xbf16> to vector<256x8xbf16>
    %c0_2 = arith.constant 0 : index
    %c0_3 = arith.constant 0 : index
    %c0_4 = arith.constant 0 : index
    %9 = vector.load %arg3[%c0_2, %c0_3, %c0_4] : memref<9x8x8xbf16, #tpu.memory_space<vmem>>, vector<1x8x8xbf16>
    %10 = vector.shape_cast %9 : vector<1x8x8xbf16> to vector<8x8xbf16>
    %cst_5 = arith.constant dense<0.000000e+00> : vector<256x8xf32>
    %11 = tpu.matmul %8, %10, %cst_5 {dimension_numbers = #tpu.dot_dimension_numbers<[1], [0], [0], [1], [0, 0, 1, 1], [], []>} : vector<256x8xbf16>, vector<8x8xbf16>, vector<256x8xf32> -> vector<256x8xf32>
    %12 = arith.addf %6, %11 : vector<256x8xf32>
    %13 = vector.extract_strided_slice %5 {offsets = [0, 1, 0], sizes = [16, 16, 8], strides = [1, 1, 1]} : vector<18x18x8xbf16> to vector<16x16x8xbf16>
    %14 = vector.shape_cast %13 : vector<16x16x8xbf16> to vector<256x8xbf16>
    %c1 = arith.constant 1 : index
    %c0_6 = arith.constant 0 : index
    %c0_7 = arith.constant 0 : index
    %15 = vector.load %arg3[%c1, %c0_6, %c0_7] : memref<9x8x8xbf16, #tpu.memory_space<vmem>>, vector<1x8x8xbf16>
    %16 = vector.shape_cast %15 : vector<1x8x8xbf16> to vector<8x8xbf16>
    %cst_8 = arith.constant dense<0.000000e+00> : vector<256x8xf32>
    %17 = tpu.matmul %14, %16, %cst_8 {dimension_numbers = #tpu.dot_dimension_numbers<[1], [0], [0], [1], [0, 0, 1, 1], [], []>} : vector<256x8xbf16>, vector<8x8xbf16>, vector<256x8xf32> -> vector<256x8xf32>
    %18 = arith.addf %12, %17 : vector<256x8xf32>
    %19 = vector.extract_strided_slice %5 {offsets = [0, 2, 0], sizes = [16, 16, 8], strides = [1, 1, 1]} : vector<18x18x8xbf16> to vector<16x16x8xbf16>
    %20 = vector.shape_cast %19 : vector<16x16x8xbf16> to vector<256x8xbf16>
    %c2 = arith.constant 2 : index
    %c0_9 = arith.constant 0 : index
    %c0_10 = arith.constant 0 : index
    %21 = vector.load %arg3[%c2, %c0_9, %c0_10] : memref<9x8x8xbf16, #tpu.memory_space<vmem>>, vector<1x8x8xbf16>
    %22 = vector.shape_cast %21 : vector<1x8x8xbf16> to vector<8x8xbf16>
    %cst_11 = arith.constant dense<0.000000e+00> : vector<256x8xf32>
    %23 = tpu.matmul %20, %22, %cst_11 {dimension_numbers = #tpu.dot_dimension_numbers<[1], [0], [0], [1], [0, 0, 1, 1], [], []>} : vector<256x8xbf16>, vector<8x8xbf16>, vector<256x8xf32> -> vector<256x8xf32>
    %24 = arith.addf %18, %23 : vector<256x8xf32>
    %25 = vector.extract_strided_slice %5 {offsets = [1, 0, 0], sizes = [16, 16, 8], strides = [1, 1, 1]} : vector<18x18x8xbf16> to vector<16x16x8xbf16>
    %26 = vector.shape_cast %25 : vector<16x16x8xbf16> to vector<256x8xbf16>
    %c3 = arith.constant 3 : index
    %c0_12 = arith.constant 0 : index
    %c0_13 = arith.constant 0 : index
    %27 = vector.load %arg3[%c3, %c0_12, %c0_13] : memref<9x8x8xbf16, #tpu.memory_space<vmem>>, vector<1x8x8xbf16>
    %28 = vector.shape_cast %27 : vector<1x8x8xbf16> to vector<8x8xbf16>
    %cst_14 = arith.constant dense<0.000000e+00> : vector<256x8xf32>
    %29 = tpu.matmul %26, %28, %cst_14 {dimension_numbers = #tpu.dot_dimension_numbers<[1], [0], [0], [1], [0, 0, 1, 1], [], []>} : vector<256x8xbf16>, vector<8x8xbf16>, vector<256x8xf32> -> vector<256x8xf32>
    %30 = arith.addf %24, %29 : vector<256x8xf32>
    %31 = vector.extract_strided_slice %5 {offsets = [1, 1, 0], sizes = [16, 16, 8], strides = [1, 1, 1]} : vector<18x18x8xbf16> to vector<16x16x8xbf16>
    %32 = vector.shape_cast %31 : vector<16x16x8xbf16> to vector<256x8xbf16>
    %c4 = arith.constant 4 : index
    %c0_15 = arith.constant 0 : index
    %c0_16 = arith.constant 0 : index
    %33 = vector.load %arg3[%c4, %c0_15, %c0_16] : memref<9x8x8xbf16, #tpu.memory_space<vmem>>, vector<1x8x8xbf16>
    %34 = vector.shape_cast %33 : vector<1x8x8xbf16> to vector<8x8xbf16>
    %cst_17 = arith.constant dense<0.000000e+00> : vector<256x8xf32>
    %35 = tpu.matmul %32, %34, %cst_17 {dimension_numbers = #tpu.dot_dimension_numbers<[1], [0], [0], [1], [0, 0, 1, 1], [], []>} : vector<256x8xbf16>, vector<8x8xbf16>, vector<256x8xf32> -> vector<256x8xf32>
    %36 = arith.addf %30, %35 : vector<256x8xf32>
    %37 = vector.extract_strided_slice %5 {offsets = [1, 2, 0], sizes = [16, 16, 8], strides = [1, 1, 1]} : vector<18x18x8xbf16> to vector<16x16x8xbf16>
    %38 = vector.shape_cast %37 : vector<16x16x8xbf16> to vector<256x8xbf16>
    %c5 = arith.constant 5 : index
    %c0_18 = arith.constant 0 : index
    %c0_19 = arith.constant 0 : index
    %39 = vector.load %arg3[%c5, %c0_18, %c0_19] : memref<9x8x8xbf16, #tpu.memory_space<vmem>>, vector<1x8x8xbf16>
    %40 = vector.shape_cast %39 : vector<1x8x8xbf16> to vector<8x8xbf16>
    %cst_20 = arith.constant dense<0.000000e+00> : vector<256x8xf32>
    %41 = tpu.matmul %38, %40, %cst_20 {dimension_numbers = #tpu.dot_dimension_numbers<[1], [0], [0], [1], [0, 0, 1, 1], [], []>} : vector<256x8xbf16>, vector<8x8xbf16>, vector<256x8xf32> -> vector<256x8xf32>
    %42 = arith.addf %36, %41 : vector<256x8xf32>
    %43 = vector.extract_strided_slice %5 {offsets = [2, 0, 0], sizes = [16, 16, 8], strides = [1, 1, 1]} : vector<18x18x8xbf16> to vector<16x16x8xbf16>
    %44 = vector.shape_cast %43 : vector<16x16x8xbf16> to vector<256x8xbf16>
    %c6 = arith.constant 6 : index
    %c0_21 = arith.constant 0 : index
    %c0_22 = arith.constant 0 : index
    %45 = vector.load %arg3[%c6, %c0_21, %c0_22] : memref<9x8x8xbf16, #tpu.memory_space<vmem>>, vector<1x8x8xbf16>
    %46 = vector.shape_cast %45 : vector<1x8x8xbf16> to vector<8x8xbf16>
    %cst_23 = arith.constant dense<0.000000e+00> : vector<256x8xf32>
    %47 = tpu.matmul %44, %46, %cst_23 {dimension_numbers = #tpu.dot_dimension_numbers<[1], [0], [0], [1], [0, 0, 1, 1], [], []>} : vector<256x8xbf16>, vector<8x8xbf16>, vector<256x8xf32> -> vector<256x8xf32>
    %48 = arith.addf %42, %47 : vector<256x8xf32>
    %49 = vector.extract_strided_slice %5 {offsets = [2, 1, 0], sizes = [16, 16, 8], strides = [1, 1, 1]} : vector<18x18x8xbf16> to vector<16x16x8xbf16>
    %50 = vector.shape_cast %49 : vector<16x16x8xbf16> to vector<256x8xbf16>
    %c7 = arith.constant 7 : index
    %c0_24 = arith.constant 0 : index
    %c0_25 = arith.constant 0 : index
    %51 = vector.load %arg3[%c7, %c0_24, %c0_25] : memref<9x8x8xbf16, #tpu.memory_space<vmem>>, vector<1x8x8xbf16>
    %52 = vector.shape_cast %51 : vector<1x8x8xbf16> to vector<8x8xbf16>
    %cst_26 = arith.constant dense<0.000000e+00> : vector<256x8xf32>
    %53 = tpu.matmul %50, %52, %cst_26 {dimension_numbers = #tpu.dot_dimension_numbers<[1], [0], [0], [1], [0, 0, 1, 1], [], []>} : vector<256x8xbf16>, vector<8x8xbf16>, vector<256x8xf32> -> vector<256x8xf32>
    %54 = arith.addf %48, %53 : vector<256x8xf32>
    %55 = vector.extract_strided_slice %5 {offsets = [2, 2, 0], sizes = [16, 16, 8], strides = [1, 1, 1]} : vector<18x18x8xbf16> to vector<16x16x8xbf16>
    %56 = vector.shape_cast %55 : vector<16x16x8xbf16> to vector<256x8xbf16>
    %c8 = arith.constant 8 : index
    %c0_27 = arith.constant 0 : index
    %c0_28 = arith.constant 0 : index
    %57 = vector.load %arg3[%c8, %c0_27, %c0_28] : memref<9x8x8xbf16, #tpu.memory_space<vmem>>, vector<1x8x8xbf16>
    %58 = vector.shape_cast %57 : vector<1x8x8xbf16> to vector<8x8xbf16>
    %cst_29 = arith.constant dense<0.000000e+00> : vector<256x8xf32>
    %59 = tpu.matmul %56, %58, %cst_29 {dimension_numbers = #tpu.dot_dimension_numbers<[1], [0], [0], [1], [0, 0, 1, 1], [], []>} : vector<256x8xbf16>, vector<8x8xbf16>, vector<256x8xf32> -> vector<256x8xf32>
    %60 = arith.addf %54, %59 : vector<256x8xf32>
    %c0_30 = arith.constant 0 : index
    %c0_31 = arith.constant 0 : index
    %61 = vector.load %arg4[%c0_30, %c0_31] : memref<1x8xf32, #tpu.memory_space<vmem>>, vector<1x8xf32>
    %62 = vector.broadcast %61 : vector<1x8xf32> to vector<256x8xf32>
    %63 = arith.addf %60, %62 : vector<256x8xf32>
    %cst_32 = arith.constant 0.000000e+00 : f32
    %64 = vector.broadcast %cst_32 : f32 to vector<256x8xf32>
    %65 = arith.maximumf %63, %64 : vector<256x8xf32>
    %66 = vector.shape_cast %65 : vector<256x8xf32> to vector<16x16x8xf32>
    %67 = arith.truncf %66 : vector<16x16x8xf32> to vector<16x16x8xbf16>
    %c0_33 = arith.constant 0 : index
    %c0_34 = arith.constant 0 : index
    %c0_35 = arith.constant 0 : index
    %c0_36 = arith.constant 0 : index
    %68 = vector.load %arg5[%c0_33, %c0_34, %c0_35, %c0_36] : memref<1x16x16x8xbf16, #tpu.memory_space<vmem>>, vector<1x16x16x8xbf16>
    %69 = vector.shape_cast %68 : vector<1x16x16x8xbf16> to vector<16x16x8xbf16>
    %70 = vector.shape_cast %67 : vector<16x16x8xbf16> to vector<1x16x16x8xbf16>
    tpu.vector_store %arg5[%c0_33, %c0_34, %c0_35, %c0_36], %70 {strides = array<i32>} : memref<1x16x16x8xbf16, #tpu.memory_space<vmem>>, vector<1x16x16x8xbf16>,
    return
  }
  func.func @transform_0(%arg0: i32, %arg1: i32) -> (i32, i32, i32, i32) {
    %c0_i32 = arith.constant 0 : i32
    %c0_i32_0 = arith.constant 0 : i32
    %c0_i32_1 = arith.constant 0 : i32
    %c0_i32_2 = arith.constant 0 : i32
    return %arg0, %c0_i32, %c0_i32_0, %c0_i32_1 : i32, i32, i32, i32
  }
  func.func @transform_1(%arg0: i32, %arg1: i32) -> (i32, i32, i32) {
    %c0_i32 = arith.constant 0 : i32
    %c0_i32_0 = arith.constant 0 : i32
    %c0_i32_1 = arith.constant 0 : i32
    %c0_i32_2 = arith.constant 0 : i32
    return %c0_i32, %c0_i32_0, %c0_i32_1 : i32, i32, i32
  }
  func.func @transform_2(%arg0: i32, %arg1: i32) -> (i32, i32) {
    %c0_i32 = arith.constant 0 : i32
    %c0_i32_0 = arith.constant 0 : i32
    %c0_i32_1 = arith.constant 0 : i32
    return %c0_i32, %c0_i32_0 : i32, i32
  }
  func.func @transform_3(%arg0: i32, %arg1: i32) -> (i32, i32, i32, i32) {
    %c0_i32 = arith.constant 0 : i32
    %c0_i32_0 = arith.constant 0 : i32
    %c0_i32_1 = arith.constant 0 : i32
    return %arg0, %arg1, %c0_i32, %c0_i32_0 : i32, i32, i32, i32
  }
}

</mosaic_0001>

<llo_original>
// kernel: tpu_custom_call.1
$region0: #{tpu_custom_call.1}
  #allocation0 [shape = 'u32[]', space=smem, size = 0x4, offset = 0x4, fixed_abs, tag = 'smem constant byte address 0x4 - core index']
  #allocation1 [shape = 'u32[72,128]{1,0:T(1,128)}', space=vmem, size = 0x9000, scoped, tag = 'internal scratch']
  #allocation2 [shape = 'bf16[18,18,8]{2,1,0:T(8,128)(2,1)}', space=vmem, size = 0x1b000, scoped, tag = 'scratch operand']
  %s0 = inlined_call_operand.vmem [shape: bf16[2,16,16,8], index: 0, kind: input, shape index: {}]
  %s1 = inlined_call_operand.vmem [shape: bf16[9,8,8], index: 1, kind: input, shape index: {}]
  %s2 = inlined_call_operand.vmem [shape: f32[1,8], index: 2, kind: input, shape index: {}]
  %s3 = inlined_call_operand.vmem [shape: bf16[2,16,16,8], index: 3, kind: output, shape index: {}]
  %s4 = sld [smem:[#allocation0]]
  $region49: #{tpu_custom_call.1} parent=0
    _
  %s6 = ssub.s32 1, %s4
  %s7 = scalar_select 0, %s6, %s4
  loop: start=0, step=1, limit=4
  $region2: #{tpu_custom_call.1} parent=0 // loop_pre_header
    _
  $region3: #{tpu_custom_call.1} parent=0 // loop_header
    %s9 = sphi 0, %s13
    %p10 = scmp.ge.s32.totalorder %s9, 4
    %s16 = sphi 0, %s28
    %s17 = sphi 0, %s24
    %s18 = sphi 0, %s16
    %s19 = sphi 0, %s17
    %s20 = sphi 0, %s18
    %s21 = sphi 0, %s19
    %s31 = sphi 0, %s33
    %s34 = sphi 0, %s31
    %s35 = sphi 0, %s34
    %s51 = sphi 0, %s35
    %s55 = sphi 0, %s55
    %s57 = sphi 0, %s55
    %s58 = sphi 0, %s57
    %s72 = sphi 0, %s58
    %s76 = sphi 0, %s76
    %s78 = sphi 0, %s76
    %s79 = sphi 0, %s78
    %s93 = sphi 0, %s79
    %s101 = sphi 0, %s103
    %s104 = sphi 0, %s101
    %s105 = sphi 0, %s104
    %s121 = sphi 0, %s105
  $region4: #{tpu_custom_call.1} parent=0 // loop_header_branch
    %12 = sbr.rel (%p10) target = $region8
  $region5: #{tpu_custom_call.1} parent=0 // loop_body
    %s14 = ssub.s32 %s9, 1
    %s15 = ssub.s32 %s9, 2
    %s22 = sadd.s32 1, %s17
    %p23 = scmp.ge.s32.totalorder %s22, 1
    %s24 = scalar_select %p23, 0, %s22
    %s25 = sadd.s32 1, %s16
    %s26 = scalar_select %p23, %s25, %s16
    %p27 = scmp.ge.s32.totalorder %s26, 2
    %s28 = scalar_select %p27, 0, %s26
    %s29 = ssub.s32 %s16, %s28
    %p30 = scmp.eq.s32.totalorder %s29, 0
    %s32 = sadd.s32 %s31, 1
    %s33 = scalar_select %p30, %s31, %s32
    %p36 = pneg %p30
    %p37 = scmp.eq.s32.totalorder %s9, 1
    %p38 = por %p36, %p37
    %p39 = scmp.ne.s32.totalorder %s31, %s34
    %p40 = scmp.eq.s32.totalorder %s9, 0
    %p41 = por %p39, %p40
    %p42 = scmp.ne.s32.totalorder %s31, %s34
    %p43 = scmp.eq.s32.totalorder %s14, 1
    %p44 = por %p42, %p43
    %p45 = scmp.ne.s32.totalorder %s34, %s35
    %p46 = scmp.eq.s32.totalorder %s14, 0
    %p47 = por %p45, %p46
    %p48 = scmp.ne.s32.totalorder %s34, %s35
    %p49 = scmp.eq.s32.totalorder %s15, 1
    %p50 = por %p48, %p49
    %p52 = scmp.ne.s32.totalorder %s35, %s51
    %p53 = scmp.eq.s32.totalorder %s15, 0
    %p54 = por %p52, %p53
    %s56 = sadd.s32 %s55, 1
    %p59 = scmp.eq.s32.totalorder %s9, 1
    %p60 = scmp.ne.s32.totalorder %s55, %s57
    %p61 = scmp.eq.s32.totalorder %s9, 0
    %p62 = por %p60, %p61
    %p63 = scmp.ne.s32.totalorder %s55, %s57
    %p64 = scmp.eq.s32.totalorder %s14, 1
    %p65 = por %p63, %p64
    %p66 = scmp.ne.s32.totalorder %s57, %s58
    %p67 = scmp.eq.s32.totalorder %s14, 0
    %p68 = por %p66, %p67
    %p69 = scmp.ne.s32.totalorder %s57, %s58
    %p70 = scmp.eq.s32.totalorder %s15, 1
    %p71 = por %p69, %p70
    %p73 = scmp.ne.s32.totalorder %s58, %s72
    %p74 = scmp.eq.s32.totalorder %s15, 0
    %p75 = por %p73, %p74
    %s77 = sadd.s32 %s76, 1
    %p80 = scmp.eq.s32.totalorder %s9, 1
    %p81 = scmp.ne.s32.totalorder %s76, %s78
    %p82 = scmp.eq.s32.totalorder %s9, 0
    %p83 = por %p81, %p82
    %p84 = scmp.ne.s32.totalorder %s76, %s78
    %p85 = scmp.eq.s32.totalorder %s14, 1
    %p86 = por %p84, %p85
    %p87 = scmp.ne.s32.totalorder %s78, %s79
    %p88 = scmp.eq.s32.totalorder %s14, 0
    %p89 = por %p87, %p88
    %p90 = scmp.ne.s32.totalorder %s78, %s79
    %p91 = scmp.eq.s32.totalorder %s15, 1
    %p92 = por %p90, %p91
    %p94 = scmp.ne.s32.totalorder %s79, %s93
    %p95 = scmp.eq.s32.totalorder %s15, 0
    %p96 = por %p94, %p95
    %s97 = ssub.s32 %s16, %s28
    %s98 = ssub.s32 %s17, %s24
    %s99 = sor.u32 %s97, %s98
    %p100 = scmp.eq.s32.totalorder %s99, 0
    %s102 = sadd.s32 %s101, 1
    %s103 = scalar_select %p100, %s101, %s102
    %p106 = pneg %p100
    %p107 = scmp.eq.s32.totalorder %s9, 1
    %p108 = por %p106, %p107
    %p109 = scmp.ne.s32.totalorder %s101, %s104
    %p110 = scmp.eq.s32.totalorder %s9, 0
    %p111 = por %p109, %p110
    %p112 = scmp.ne.s32.totalorder %s101, %s104
    %p113 = scmp.eq.s32.totalorder %s14, 1
    %p114 = por %p112, %p113
    %p115 = scmp.ne.s32.totalorder %s104, %s105
    %p116 = scmp.eq.s32.totalorder %s14, 0
    %p117 = por %p115, %p116
    %p118 = scmp.ne.s32.totalorder %s104, %s105
    %p119 = scmp.eq.s32.totalorder %s15, 1
    %p120 = por %p118, %p119
    %p122 = scmp.ne.s32.totalorder %s105, %s121
    %p123 = scmp.eq.s32.totalorder %s15, 0
    %p124 = por %p122, %p123
    %p125 = scmp.le.s32.totalorder 1, %s9
    %p126 = scmp.lt.s32.totalorder %s9, 3
    %p127 = pnand %p125, %p126
    %p128 = pneg %p127
    // Predicated region
    $region9: #{tpu_custom_call.1} parent=5 // pred_check
      _
    $region10: #{tpu_custom_call.1} parent=5 // pred_check_branch
      %130 = sbr.rel (%p127) target = $region12
    $region11: #{tpu_custom_call.1} parent=5 // pred_region
      %s131 = ssub.s32 %s9, 1
      // Predicated region
      $region13: #{tpu_custom_call.1} parent=11 // pred_check
        %p132 = pneg %p68
      $region14: #{tpu_custom_call.1} parent=11 // pred_check_branch
        %134 = sbr.rel (%p132) target = $region16
      $region15: #{tpu_custom_call.1} parent=11 // pred_region
        _
      $region16: #{tpu_custom_call.1} parent=11 // pred_fallthru
        _
      // Predicated region
      $region17: #{tpu_custom_call.1} parent=11 // pred_check
        %p135 = pneg %p89
      $region18: #{tpu_custom_call.1} parent=11 // pred_check_branch
        %137 = sbr.rel (%p135) target = $region20
      $region19: #{tpu_custom_call.1} parent=11 // pred_region
        _
      $region20: #{tpu_custom_call.1} parent=11 // pred_fallthru
        _
    $region12: #{tpu_custom_call.1} parent=5 // pred_fallthru
      _
    %p138 = scmp.lt.s32.totalorder %s9, 2
    // Predicated region
    $region21: #{tpu_custom_call.1} parent=5 // pred_check
      %p139 = pneg %p138
    $region22: #{tpu_custom_call.1} parent=5 // pred_check_branch
      %141 = sbr.rel (%p139) target = $region24
    $region23: #{tpu_custom_call.1} parent=5 // pred_region
      // Predicated region
      $region25: #{tpu_custom_call.1} parent=23 // pred_check
        %p142 = pneg %p41
      $region26: #{tpu_custom_call.1} parent=23 // pred_check_branch
        %144 = sbr.rel (%p142) target = $region28
      $region27: #{tpu_custom_call.1} parent=23 // pred_region
        %p145 = scmp.lt.s32.totalorder %s16, 1
        %s146 = scalar_select %p145, %s16, 1
        %s147 = smul.addr %s146, 32
        %s148 = smul.addr %s147, 4
        %s149 = scalar_lea.vmem %s0, %s148
      $region28: #{tpu_custom_call.1} parent=23 // pred_fallthru
        _
    $region24: #{tpu_custom_call.1} parent=5 // pred_fallthru
      _
    %p150 = scmp.le.s32.totalorder 1, %s9
    %p151 = scmp.lt.s32.totalorder %s9, 3
    %p152 = pnand %p150, %p151
    %p153 = pneg %p152
    // Predicated region
    $region29: #{tpu_custom_call.1} parent=5 // pred_check
      _
    $region30: #{tpu_custom_call.1} parent=5 // pred_check_branch
      %155 = sbr.rel (%p152) target = $region32
    $region31: #{tpu_custom_call.1} parent=5 // pred_region
      %s156 = ssub.s32 %s9, 1
      %p157 = scmp.lt.s32.totalorder %s18, 1
      %s158 = scalar_select %p157, %s18, 1
      %s159 = smul.addr %s158, 32
      %s160 = smul.addr %s159, 4
      %s161 = scalar_lea.vmem %s0, %s160
      %p162 = pneg %p47
      %p163 = pneg %p44
      %p164 = pneg %p68
      %p165 = pneg %p65
      %p166 = pneg %p89
      %p167 = pneg %p86
      %p168 = pneg %p117
      %p169 = pneg %p114
      %s170 = smul.u32 16, %s19
      %p171 = scmp.lt.s32.totalorder %s18, 1
      %s172 = scalar_select %p171, %s18, 1
      %p173 = scmp.lt.s32.totalorder %s170, 15
      %s174 = scalar_select %p173, %s170, 15
      %s175 = smul.addr %s174, 2
      %s176 = smul.addr %s172, 32
      %s177 = sadd.s32 %s175, %s176
      %s178 = smul.addr %s177, 4
      %s179 = scalar_lea.vmem %s3, %s178
      %p180 = scmp.lt.s32.totalorder %s18, 1
      %s181 = scalar_select %p180, %s18, 1
      %s182 = smul.addr %s181, 32
      %s183 = smul.addr %s182, 4
      %s184 = scalar_lea.vmem %s0, %s183
      %s185 = smul.u32 16, %s19
      %p186 = scmp.lt.s32.totalorder %s18, 1
      %s187 = scalar_select %p186, %s18, 1
      %p188 = scmp.lt.s32.totalorder %s185, 15
      %s189 = scalar_select %p188, %s185, 15
      %s190 = smul.addr %s189, 2
      %s191 = smul.addr %s187, 32
      %s192 = sadd.s32 %s190, %s191
      %s193 = smul.addr %s192, 4
      %s194 = scalar_lea.vmem %s3, %s193
      %s195 = smul.u32 16, %s19
      %p197 = scmp.eq.s32.totalorder %s19, 0
      // Predicated region
      $region33: #{tpu_custom_call.1} parent=31 // pred_check
        %p198 = pneg %p197
      $region34: #{tpu_custom_call.1} parent=31 // pred_check_branch
        %200 = sbr.rel (%p198) target = $region36
      $region35: #{tpu_custom_call.1} parent=31 // pred_region
        %vm201 = vcmask 60416
        %202 = vst.msk [vmem:[#allocation2] sm:$0xf] %vm201, 0
        %203 = vst.msk [vmem:[#allocation2 + $0x4] sm:$0xf] %vm201, 0
        %vm204 = vcmask 57344
        %205 = vst.msk [vmem:[#allocation2 + $0x8] sm:$0x1] %vm204, 0
        %206 = vst.msk [vmem:[#allocation2 + $0xc] sm:$0xf] %vm201, 0
        %207 = vst.msk [vmem:[#allocation2 + $0x10] sm:$0xf] %vm201, 0
        %208 = vst.msk [vmem:[#allocation2 + $0x14] sm:$0x1] %vm204, 0
        %209 = vst.msk [vmem:[#allocation2 + $0x18] sm:$0xf] %vm201, 0
        %210 = vst.msk [vmem:[#allocation2 + $0x1c] sm:$0xf] %vm201, 0
        %211 = vst.msk [vmem:[#allocation2 + $0x20] sm:$0x1] %vm204, 0
        %212 = vst.msk [vmem:[#allocation2 + $0x24] sm:$0xf] %vm201, 0
        %213 = vst.msk [vmem:[#allocation2 + $0x28] sm:$0xf] %vm201, 0
        %214 = vst.msk [vmem:[#allocation2 + $0x2c] sm:$0x1] %vm204, 0
        %215 = vst.msk [vmem:[#allocation2 + $0x30] sm:$0xf] %vm201, 0
        %216 = vst.msk [vmem:[#allocation2 + $0x34] sm:$0xf] %vm201, 0
        %217 = vst.msk [vmem:[#allocation2 + $0x38] sm:$0x1] %vm204, 0
        %218 = vst.msk [vmem:[#allocation2 + $0x3c] sm:$0xf] %vm201, 0
        %219 = vst.msk [vmem:[#allocation2 + $0x40] sm:$0xf] %vm201, 0
        %220 = vst.msk [vmem:[#allocation2 + $0x44] sm:$0x1] %vm204, 0
        %221 = vst.msk [vmem:[#allocation2 + $0x48] sm:$0xf] %vm201, 0
        %222 = vst.msk [vmem:[#allocation2 + $0x4c] sm:$0xf] %vm201, 0
        %223 = vst.msk [vmem:[#allocation2 + $0x50] sm:$0x1] %vm204, 0
        %224 = vst.msk [vmem:[#allocation2 + $0x54] sm:$0xf] %vm201, 0
        %225 = vst.msk [vmem:[#allocation2 + $0x58] sm:$0xf] %vm201, 0
        %226 = vst.msk [vmem:[#allocation2 + $0x5c] sm:$0x1] %vm204, 0
        %227 = vst.msk [vmem:[#allocation2 + $0x60] sm:$0xf] %vm201, 0
        %228 = vst.msk [vmem:[#allocation2 + $0x64] sm:$0xf] %vm201, 0
        %229 = vst.msk [vmem:[#allocation2 + $0x68] sm:$0x1] %vm204, 0
        %230 = vst.msk [vmem:[#allocation2 + $0x6c] sm:$0xf] %vm201, 0
        %231 = vst.msk [vmem:[#allocation2 + $0x70] sm:$0xf] %vm201, 0
        %232 = vst.msk [vmem:[#allocation2 + $0x74] sm:$0x1] %vm204, 0
        %233 = vst.msk [vmem:[#allocation2 + $0x78] sm:$0xf] %vm201, 0
        %234 = vst.msk [vmem:[#allocation2 + $0x7c] sm:$0xf] %vm201, 0
        %235 = vst.msk [vmem:[#allocation2 + $0x80] sm:$0x1] %vm204, 0
        %236 = vst.msk [vmem:[#allocation2 + $0x84] sm:$0xf] %vm201, 0
        %237 = vst.msk [vmem:[#allocation2 + $0x88] sm:$0xf] %vm201, 0
        %238 = vst.msk [vmem:[#allocation2 + $0x8c] sm:$0x1] %vm204, 0
        %239 = vst.msk [vmem:[#allocation2 + $0x90] sm:$0xf] %vm201, 0
        %240 = vst.msk [vmem:[#allocation2 + $0x94] sm:$0xf] %vm201, 0
        %241 = vst.msk [vmem:[#allocation2 + $0x98] sm:$0x1] %vm204, 0
        %242 = vst.msk [vmem:[#allocation2 + $0x9c] sm:$0xf] %vm201, 0
        %243 = vst.msk [vmem:[#allocation2 + $0xa0] sm:$0xf] %vm201, 0
        %244 = vst.msk [vmem:[#allocation2 + $0xa4] sm:$0x1] %vm204, 0
        %245 = vst.msk [vmem:[#allocation2 + $0xa8] sm:$0xf] %vm201, 0
        %246 = vst.msk [vmem:[#allocation2 + $0xac] sm:$0xf] %vm201, 0
        %247 = vst.msk [vmem:[#allocation2 + $0xb0] sm:$0x1] %vm204, 0
        %248 = vst.msk [vmem:[#allocation2 + $0xb4] sm:$0xf] %vm201, 0
        %249 = vst.msk [vmem:[#allocation2 + $0xb8] sm:$0xf] %vm201, 0
        %250 = vst.msk [vmem:[#allocation2 + $0xbc] sm:$0x1] %vm204, 0
        %251 = vst.msk [vmem:[#allocation2 + $0xc0] sm:$0xf] %vm201, 0
        %252 = vst.msk [vmem:[#allocation2 + $0xc4] sm:$0xf] %vm201, 0
        %253 = vst.msk [vmem:[#allocation2 + $0xc8] sm:$0x1] %vm204, 0
        %254 = vst.msk [vmem:[#allocation2 + $0xcc] sm:$0xf] %vm201, 0
        %255 = vst.msk [vmem:[#allocation2 + $0xd0] sm:$0xf] %vm201, 0
        %256 = vst.msk [vmem:[#allocation2 + $0xd4] sm:$0x1] %vm204, 0
        %v257 = vld [vmem:[%s184] sm:$0xf]
        %v258 = vld [vmem:[%s184 + $0x4] sm:$0xf]
        %v259 = vld [vmem:[%s184 + $0x8] sm:$0xf]
        %v260 = vld [vmem:[%s184 + $0xc] sm:$0xf]
        %v261 = vld [vmem:[%s184 + $0x10] sm:$0xf]
        %v262 = vld [vmem:[%s184 + $0x14] sm:$0xf]
        %v263 = vld [vmem:[%s184 + $0x18] sm:$0xf]
        %v264 = vld [vmem:[%s184 + $0x1c] sm:$0xf]
        %v265 = vld [vmem:[%s184 + $0x20] sm:$0xf]
        %v266 = vld [vmem:[%s184 + $0x24] sm:$0xf]
        %v267 = vld [vmem:[%s184 + $0x28] sm:$0xf]
        %v268 = vld [vmem:[%s184 + $0x2c] sm:$0xf]
        %v269 = vld [vmem:[%s184 + $0x30] sm:$0xf]
        %v270 = vld [vmem:[%s184 + $0x34] sm:$0xf]
        %v271 = vld [vmem:[%s184 + $0x38] sm:$0xf]
        %v272 = vld [vmem:[%s184 + $0x3c] sm:$0xf]
        %v273 = vld [vmem:[%s184 + $0x40] sm:$0xf]
        %v274 = vld [vmem:[%s184 + $0x44] sm:$0xf]
        %v275 = vld [vmem:[%s184 + $0x48] sm:$0xf]
        %v276 = vld [vmem:[%s184 + $0x4c] sm:$0xf]
        %v277 = vld [vmem:[%s184 + $0x50] sm:$0xf]
        %v278 = vld [vmem:[%s184 + $0x54] sm:$0xf]
        %v279 = vld [vmem:[%s184 + $0x58] sm:$0xf]
        %v280 = vld [vmem:[%s184 + $0x5c] sm:$0xf]
        %v281 = vld [vmem:[%s184 + $0x60] sm:$0xf]
        %v282 = vld [vmem:[%s184 + $0x64] sm:$0xf]
        %v283 = vld [vmem:[%s184 + $0x68] sm:$0xf]
        %v284 = vld [vmem:[%s184 + $0x6c] sm:$0xf]
        %v285 = vld [vmem:[%s184 + $0x70] sm:$0xf]
        %v286 = vld [vmem:[%s184 + $0x74] sm:$0xf]
        %v287 = vld [vmem:[%s184 + $0x78] sm:$0xf]
        %v288 = vld [vmem:[%s184 + $0x7c] sm:$0xf]
        %vm289 = vsmask.f32 256
        %vm290 = vsmask.f32 4368
        %vm291 = vmor %vm289, %vm290
        %v293 = vshrl.u32 %v257, 16
        %v295 = vrot.slane %v293, 7
        %v296 = vshll.u32 %v257, 16
        %v298 = vor.u32 %v295, %v296
        %v299 = vrot.slane %v295, 4
        %v301 = vshrl.u32 %v258, 16
        %v303 = vrot.slane %v301, 7
        %v304 = vshll.u32 %v258, 16
        %v306 = vor.u32 %v303, %v304
        %v307 = vsel %vm291, %v299, %v306
        %v308 = vrot.slane %v303, 4
        %v310 = vshrl.u32 %v259, 16
        %v312 = vrot.slane %v310, 7
        %v313 = vshll.u32 %v259, 16
        %v315 = vor.u32 %v312, %v313
        %v316 = vrot.slane %v312, 4
        %v318 = vshrl.u32 %v260, 16
        %v320 = vrot.slane %v318, 7
        %v321 = vshll.u32 %v260, 16
        %v323 = vor.u32 %v320, %v321
        %v324 = vsel %vm291, %v316, %v323
        %v325 = vrot.slane %v320, 4
        %v327 = vshrl.u32 %v261, 16
        %v329 = vrot.slane %v327, 7
        %v330 = vshll.u32 %v261, 16
        %v332 = vor.u32 %v329, %v330
        %v333 = vrot.slane %v329, 4
        %v335 = vshrl.u32 %v262, 16
        %v337 = vrot.slane %v335, 7
        %v338 = vshll.u32 %v262, 16
        %v340 = vor.u32 %v337, %v338
        %v341 = vsel %vm291, %v333, %v340
        %v342 = vrot.slane %v337, 4
        %v344 = vshrl.u32 %v263, 16
        %v346 = vrot.slane %v344, 7
        %v347 = vshll.u32 %v263, 16
        %v349 = vor.u32 %v346, %v347
        %v350 = vrot.slane %v346, 4
        %v352 = vshrl.u32 %v264, 16
        %v354 = vrot.slane %v352, 7
        %v355 = vshll.u32 %v264, 16
        %v357 = vor.u32 %v354, %v355
        %v358 = vsel %vm291, %v350, %v357
        %v359 = vrot.slane %v354, 4
        %v361 = vshrl.u32 %v265, 16
        %v363 = vrot.slane %v361, 7
        %v364 = vshll.u32 %v265, 16
        %v366 = vor.u32 %v363, %v364
        %v367 = vrot.slane %v363, 4
        %v369 = vshrl.u32 %v266, 16
        %v371 = vrot.slane %v369, 7
        %v372 = vshll.u32 %v266, 16
        %v374 = vor.u32 %v371, %v372
        %v375 = vsel %vm291, %v367, %v374
        %v376 = vrot.slane %v371, 4
        %v378 = vshrl.u32 %v267, 16
        %v380 = vrot.slane %v378, 7
        %v381 = vshll.u32 %v267, 16
        %v383 = vor.u32 %v380, %v381
        %v384 = vrot.slane %v380, 4
        %v386 = vshrl.u32 %v268, 16
        %v388 = vrot.slane %v386, 7
        %v389 = vshll.u32 %v268, 16
        %v391 = vor.u32 %v388, %v389
        %v392 = vsel %vm291, %v384, %v391
        %v393 = vrot.slane %v388, 4
        %v395 = vshrl.u32 %v269, 16
        %v397 = vrot.slane %v395, 7
        %v398 = vshll.u32 %v269, 16
        %v400 = vor.u32 %v397, %v398
        %v401 = vrot.slane %v397, 4
        %v403 = vshrl.u32 %v270, 16
        %v405 = vrot.slane %v403, 7
        %v406 = vshll.u32 %v270, 16
        %v408 = vor.u32 %v405, %v406
        %v409 = vsel %vm291, %v401, %v408
        %v410 = vrot.slane %v405, 4
        %v412 = vshrl.u32 %v271, 16
        %v414 = vrot.slane %v412, 7
        %v415 = vshll.u32 %v271, 16
        %v417 = vor.u32 %v414, %v415
        %v418 = vrot.slane %v414, 4
        %v420 = vshrl.u32 %v272, 16
        %v422 = vrot.slane %v420, 7
        %v423 = vshll.u32 %v272, 16
        %v425 = vor.u32 %v422, %v423
        %v426 = vsel %vm291, %v418, %v425
        %v427 = vrot.slane %v422, 4
        %v429 = vshrl.u32 %v273, 16
        %v431 = vrot.slane %v429, 7
        %v432 = vshll.u32 %v273, 16
        %v434 = vor.u32 %v431, %v432
        %v435 = vrot.slane %v431, 4
        %v437 = vshrl.u32 %v274, 16
        %v439 = vrot.slane %v437, 7
        %v440 = vshll.u32 %v274, 16
        %v442 = vor.u32 %v439, %v440
        %v443 = vsel %vm291, %v435, %v442
        %v444 = vrot.slane %v439, 4
        %v446 = vshrl.u32 %v275, 16
        %v448 = vrot.slane %v446, 7
        %v449 = vshll.u32 %v275, 16
        %v451 = vor.u32 %v448, %v449
        %v452 = vrot.slane %v448, 4
        %v454 = vshrl.u32 %v276, 16
        %v456 = vrot.slane %v454, 7
        %v457 = vshll.u32 %v276, 16
        %v459 = vor.u32 %v456, %v457
        %v460 = vsel %vm291, %v452, %v459
        %v461 = vrot.slane %v456, 4
        %v463 = vshrl.u32 %v277, 16
        %v465 = vrot.slane %v463, 7
        %v466 = vshll.u32 %v277, 16
        %v468 = vor.u32 %v465, %v466
        %v469 = vrot.slane %v465, 4
        %v471 = vshrl.u32 %v278, 16
        %v473 = vrot.slane %v471, 7
        %v474 = vshll.u32 %v278, 16
        %v476 = vor.u32 %v473, %v474
        %v477 = vsel %vm291, %v469, %v476
        %v478 = vrot.slane %v473, 4
        %v480 = vshrl.u32 %v279, 16
        %v482 = vrot.slane %v480, 7
        %v483 = vshll.u32 %v279, 16
        %v485 = vor.u32 %v482, %v483
        %v486 = vrot.slane %v482, 4
        %v488 = vshrl.u32 %v280, 16
        %v490 = vrot.slane %v488, 7
        %v491 = vshll.u32 %v280, 16
        %v493 = vor.u32 %v490, %v491
        %v494 = vsel %vm291, %v486, %v493
        %v495 = vrot.slane %v490, 4
        %v497 = vshrl.u32 %v281, 16
        %v499 = vrot.slane %v497, 7
        %v500 = vshll.u32 %v281, 16
        %v502 = vor.u32 %v499, %v500
        %v503 = vrot.slane %v499, 4
        %v505 = vshrl.u32 %v282, 16
        %v507 = vrot.slane %v505, 7
        %v508 = vshll.u32 %v282, 16
        %v510 = vor.u32 %v507, %v508
        %v511 = vsel %vm291, %v503, %v510
        %v512 = vrot.slane %v507, 4
        %v514 = vshrl.u32 %v283, 16
        %v516 = vrot.slane %v514, 7
        %v517 = vshll.u32 %v283, 16
        %v519 = vor.u32 %v516, %v517
        %v520 = vrot.slane %v516, 4
        %v522 = vshrl.u32 %v284, 16
        %v524 = vrot.slane %v522, 7
        %v525 = vshll.u32 %v284, 16
        %v527 = vor.u32 %v524, %v525
        %v528 = vsel %vm291, %v520, %v527
        %v529 = vrot.slane %v524, 4
        %v531 = vshrl.u32 %v285, 16
        %v533 = vrot.slane %v531, 7
        %v534 = vshll.u32 %v285, 16
        %v536 = vor.u32 %v533, %v534
        %v537 = vrot.slane %v533, 4
        %v539 = vshrl.u32 %v286, 16
        %v541 = vrot.slane %v539, 7
        %v542 = vshll.u32 %v286, 16
        %v544 = vor.u32 %v541, %v542
        %v545 = vsel %vm291, %v537, %v544
        %v546 = vrot.slane %v541, 4
        %v548 = vshrl.u32 %v287, 16
        %v550 = vrot.slane %v548, 7
        %v551 = vshll.u32 %v287, 16
        %v553 = vor.u32 %v550, %v551
        %v554 = vrot.slane %v550, 4
        %v556 = vshrl.u32 %v288, 16
        %v558 = vrot.slane %v556, 7
        %v559 = vshll.u32 %v288, 16
        %v561 = vor.u32 %v558, %v559
        %v562 = vsel %vm291, %v554, %v561
        %v563 = vrot.slane %v558, 4
        %s612 = scalar_lea.vmem [#allocation2], 12
        %vm613 = vcmask 60416
        %vm614 = vsmask.f32 7938
        %vm615 = vmand %vm613, %vm614
        %v616 = vld [vmem:[%s612] sm:$0xf]
        %v617 = vsel %vm615, %v298, %v616
        %618 = vst [vmem:[%s612] sm:$0xf] %v617
        %619 = vst.msk [vmem:[%s612 + $0x4] sm:$0xf] %vm201, %v307
        %vm620 = vcmask 57344
        %vm621 = vmand %vm620, %vm289
        %v622 = vld [vmem:[%s612 + $0x8] sm:$0x1]
        %v623 = vsel %vm621, %v308, %v622
        %624 = vst [vmem:[%s612 + $0x8] sm:$0x1] %v623
        %v625 = vld [vmem:[%s612 + $0xc] sm:$0xf]
        %v626 = vsel %vm615, %v315, %v625
        %627 = vst [vmem:[%s612 + $0xc] sm:$0xf] %v626
        %628 = vst.msk [vmem:[%s612 + $0x10] sm:$0xf] %vm201, %v324
        %v629 = vld [vmem:[%s612 + $0x14] sm:$0x1]
        %v630 = vsel %vm621, %v325, %v629
        %631 = vst [vmem:[%s612 + $0x14] sm:$0x1] %v630
        %v632 = vld [vmem:[%s612 + $0x18] sm:$0xf]
        %v633 = vsel %vm615, %v332, %v632
        %634 = vst [vmem:[%s612 + $0x18] sm:$0xf] %v633
        %635 = vst.msk [vmem:[%s612 + $0x1c] sm:$0xf] %vm201, %v341
        %v636 = vld [vmem:[%s612 + $0x20] sm:$0x1]
        %v637 = vsel %vm621, %v342, %v636
        %638 = vst [vmem:[%s612 + $0x20] sm:$0x1] %v637
        %v639 = vld [vmem:[%s612 + $0x24] sm:$0xf]
        %v640 = vsel %vm615, %v349, %v639
        %641 = vst [vmem:[%s612 + $0x24] sm:$0xf] %v640
        %642 = vst.msk [vmem:[%s612 + $0x28] sm:$0xf] %vm201, %v358
        %v643 = vld [vmem:[%s612 + $0x2c] sm:$0x1]
        %v644 = vsel %vm621, %v359, %v643
        %645 = vst [vmem:[%s612 + $0x2c] sm:$0x1] %v644
        %v646 = vld [vmem:[%s612 + $0x30] sm:$0xf]
        %v647 = vsel %vm615, %v366, %v646
        %648 = vst [vmem:[%s612 + $0x30] sm:$0xf] %v647
        %649 = vst.msk [vmem:[%s612 + $0x34] sm:$0xf] %vm201, %v375
        %v650 = vld [vmem:[%s612 + $0x38] sm:$0x1]
        %v651 = vsel %vm621, %v376, %v650
        %652 = vst [vmem:[%s612 + $0x38] sm:$0x1] %v651
        %v653 = vld [vmem:[%s612 + $0x3c] sm:$0xf]
        %v654 = vsel %vm615, %v383, %v653
        %655 = vst [vmem:[%s612 + $0x3c] sm:$0xf] %v654
        %656 = vst.msk [vmem:[%s612 + $0x40] sm:$0xf] %vm201, %v392
        %v657 = vld [vmem:[%s612 + $0x44] sm:$0x1]
        %v658 = vsel %vm621, %v393, %v657
        %659 = vst [vmem:[%s612 + $0x44] sm:$0x1] %v658
        %v660 = vld [vmem:[%s612 + $0x48] sm:$0xf]
        %v661 = vsel %vm615, %v400, %v660
        %662 = vst [vmem:[%s612 + $0x48] sm:$0xf] %v661
        %663 = vst.msk [vmem:[%s612 + $0x4c] sm:$0xf] %vm201, %v409
        %v664 = vld [vmem:[%s612 + $0x50] sm:$0x1]
        %v665 = vsel %vm621, %v410, %v664
        %666 = vst [vmem:[%s612 + $0x50] sm:$0x1] %v665
        %v667 = vld [vmem:[%s612 + $0x54] sm:$0xf]
        %v668 = vsel %vm615, %v417, %v667
        %669 = vst [vmem:[%s612 + $0x54] sm:$0xf] %v668
        %670 = vst.msk [vmem:[%s612 + $0x58] sm:$0xf] %vm201, %v426
        %v671 = vld [vmem:[%s612 + $0x5c] sm:$0x1]
        %v672 = vsel %vm621, %v427, %v671
        %673 = vst [vmem:[%s612 + $0x5c] sm:$0x1] %v672
        %v674 = vld [vmem:[%s612 + $0x60] sm:$0xf]
        %v675 = vsel %vm615, %v434, %v674
        %676 = vst [vmem:[%s612 + $0x60] sm:$0xf] %v675
        %677 = vst.msk [vmem:[%s612 + $0x64] sm:$0xf] %vm201, %v443
        %v678 = vld [vmem:[%s612 + $0x68] sm:$0x1]
        %v679 = vsel %vm621, %v444, %v678
        %680 = vst [vmem:[%s612 + $0x68] sm:$0x1] %v679
        %v681 = vld [vmem:[%s612 + $0x6c] sm:$0xf]
        %v682 = vsel %vm615, %v451, %v681
        %683 = vst [vmem:[%s612 + $0x6c] sm:$0xf] %v682
        %684 = vst.msk [vmem:[%s612 + $0x70] sm:$0xf] %vm201, %v460
        %v685 = vld [vmem:[%s612 + $0x74] sm:$0x1]
        %v686 = vsel %vm621, %v461, %v685
        %687 = vst [vmem:[%s612 + $0x74] sm:$0x1] %v686
        %v688 = vld [vmem:[%s612 + $0x78] sm:$0xf]
        %v689 = vsel %vm615, %v468, %v688
        %690 = vst [vmem:[%s612 + $0x78] sm:$0xf] %v689
        %691 = vst.msk [vmem:[%s612 + $0x7c] sm:$0xf] %vm201, %v477
        %v692 = vld [vmem:[%s612 + $0x80] sm:$0x1]
        %v693 = vsel %vm621, %v478, %v692
        %694 = vst [vmem:[%s612 + $0x80] sm:$0x1] %v693
        %v695 = vld [vmem:[%s612 + $0x84] sm:$0xf]
        %v696 = vsel %vm615, %v485, %v695
        %697 = vst [vmem:[%s612 + $0x84] sm:$0xf] %v696
        %698 = vst.msk [vmem:[%s612 + $0x88] sm:$0xf] %vm201, %v494
        %v699 = vld [vmem:[%s612 + $0x8c] sm:$0x1]
        %v700 = vsel %vm621, %v495, %v699
        %701 = vst [vmem:[%s612 + $0x8c] sm:$0x1] %v700
        %v702 = vld [vmem:[%s612 + $0x90] sm:$0xf]
        %v703 = vsel %vm615, %v502, %v702
        %704 = vst [vmem:[%s612 + $0x90] sm:$0xf] %v703
        %705 = vst.msk [vmem:[%s612 + $0x94] sm:$0xf] %vm201, %v511
        %v706 = vld [vmem:[%s612 + $0x98] sm:$0x1]
        %v707 = vsel %vm621, %v512, %v706
        %708 = vst [vmem:[%s612 + $0x98] sm:$0x1] %v707
        %v709 = vld [vmem:[%s612 + $0x9c] sm:$0xf]
        %v710 = vsel %vm615, %v519, %v709
        %711 = vst [vmem:[%s612 + $0x9c] sm:$0xf] %v710
        %712 = vst.msk [vmem:[%s612 + $0xa0] sm:$0xf] %vm201, %v528
        %v713 = vld [vmem:[%s612 + $0xa4] sm:$0x1]
        %v714 = vsel %vm621, %v529, %v713
        %715 = vst [vmem:[%s612 + $0xa4] sm:$0x1] %v714
        %v716 = vld [vmem:[%s612 + $0xa8] sm:$0xf]
        %v717 = vsel %vm615, %v536, %v716
        %718 = vst [vmem:[%s612 + $0xa8] sm:$0xf] %v717
        %719 = vst.msk [vmem:[%s612 + $0xac] sm:$0xf] %vm201, %v545
        %v720 = vld [vmem:[%s612 + $0xb0] sm:$0x1]
        %v721 = vsel %vm621, %v546, %v720
        %722 = vst [vmem:[%s612 + $0xb0] sm:$0x1] %v721
        %v723 = vld [vmem:[%s612 + $0xb4] sm:$0xf]
        %v724 = vsel %vm615, %v553, %v723
        %725 = vst [vmem:[%s612 + $0xb4] sm:$0xf] %v724
        %726 = vst.msk [vmem:[%s612 + $0xb8] sm:$0xf] %vm201, %v562
        %v727 = vld [vmem:[%s612 + $0xbc] sm:$0x1]
        %v728 = vsel %vm621, %v563, %v727
        %729 = vst [vmem:[%s612 + $0xbc] sm:$0x1] %v728
      $region36: #{tpu_custom_call.1} parent=31 // pred_fallthru
        _
      %s730 = smul.u32 %s19, 16
      %s731 = smul.u32 %s730, 3
      %s732 = smul.addr %s731, 4
      %s733 = scalar_lea.vmem [#allocation2], %s732
      %v734 = vld [vmem:[%s733] sm:$0xf]
      %v735 = vld [vmem:[%s733 + $0x4] sm:$0xf]
      %v736 = vld [vmem:[%s733 + $0x8] sm:$0x1]
      %v737 = vld [vmem:[%s733 + $0xc] sm:$0xf]
      %v738 = vld [vmem:[%s733 + $0x10] sm:$0xf]
      %v739 = vld [vmem:[%s733 + $0x14] sm:$0x1]
      %v740 = vld [vmem:[%s733 + $0x18] sm:$0xf]
      %v741 = vld [vmem:[%s733 + $0x1c] sm:$0xf]
      %v742 = vld [vmem:[%s733 + $0x20] sm:$0x1]
      %v743 = vld [vmem:[%s733 + $0x24] sm:$0xf]
      %v744 = vld [vmem:[%s733 + $0x28] sm:$0xf]
      %v745 = vld [vmem:[%s733 + $0x2c] sm:$0x1]
      %v746 = vld [vmem:[%s733 + $0x30] sm:$0xf]
      %v747 = vld [vmem:[%s733 + $0x34] sm:$0xf]
      %v748 = vld [vmem:[%s733 + $0x38] sm:$0x1]
      %v749 = vld [vmem:[%s733 + $0x3c] sm:$0xf]
      %v750 = vld [vmem:[%s733 + $0x40] sm:$0xf]
      %v751 = vld [vmem:[%s733 + $0x44] sm:$0x1]
      %v752 = vld [vmem:[%s733 + $0x48] sm:$0xf]
      %v753 = vld [vmem:[%s733 + $0x4c] sm:$0xf]
      %v754 = vld [vmem:[%s733 + $0x50] sm:$0x1]
      %v755 = vld [vmem:[%s733 + $0x54] sm:$0xf]
      %v756 = vld [vmem:[%s733 + $0x58] sm:$0xf]
      %v757 = vld [vmem:[%s733 + $0x5c] sm:$0x1]
      %v758 = vld [vmem:[%s733 + $0x60] sm:$0xf]
      %v759 = vld [vmem:[%s733 + $0x64] sm:$0xf]
      %v760 = vld [vmem:[%s733 + $0x68] sm:$0x1]
      %v761 = vld [vmem:[%s733 + $0x6c] sm:$0xf]
      %v762 = vld [vmem:[%s733 + $0x70] sm:$0xf]
      %v763 = vld [vmem:[%s733 + $0x74] sm:$0x1]
      %v764 = vld [vmem:[%s733 + $0x78] sm:$0xf]
      %v765 = vld [vmem:[%s733 + $0x7c] sm:$0xf]
      %v766 = vld [vmem:[%s733 + $0x80] sm:$0x1]
      %v767 = vld [vmem:[%s733 + $0x84] sm:$0xf]
      %v768 = vld [vmem:[%s733 + $0x88] sm:$0xf]
      %v769 = vld [vmem:[%s733 + $0x8c] sm:$0x1]
      %v770 = vld [vmem:[%s733 + $0x90] sm:$0xf]
      %v771 = vld [vmem:[%s733 + $0x94] sm:$0xf]
      %v772 = vld [vmem:[%s733 + $0x98] sm:$0x1]
      %v773 = vld [vmem:[%s733 + $0x9c] sm:$0xf]
      %v774 = vld [vmem:[%s733 + $0xa0] sm:$0xf]
      %v775 = vld [vmem:[%s733 + $0xa4] sm:$0x1]
      %v776 = vld [vmem:[%s733 + $0xa8] sm:$0xf]
      %v777 = vld [vmem:[%s733 + $0xac] sm:$0xf]
      %v778 = vld [vmem:[%s733 + $0xb0] sm:$0x1]
      %v779 = vld [vmem:[%s733 + $0xb4] sm:$0xf]
      %v780 = vld [vmem:[%s733 + $0xb8] sm:$0xf]
      %v781 = vld [vmem:[%s733 + $0xbc] sm:$0x1]
      %v782 = vld [vmem:[%s733 + $0xc0] sm:$0xf]
      %v783 = vld [vmem:[%s733 + $0xc4] sm:$0xf]
      %v784 = vld [vmem:[%s733 + $0xc8] sm:$0x1]
      %v785 = vld [vmem:[%s733 + $0xcc] sm:$0xf]
      %v786 = vld [vmem:[%s733 + $0xd0] sm:$0xf]
      %v787 = vld [vmem:[%s733 + $0xd4] sm:$0x1]
      %v788 = vld [vmem:[%s1] sm:$0xf]
      %vm789 = vsmask.f32 3328
      %vm790 = vsmask.f32 7440
      %vm791 = vmor %vm789, %vm790
      %v793 = vshrl.u32 %v734, 16
      %v795 = vrot.slane %v793, 4
      %v796 = vshll.u32 %v734, 16
      %v798 = vrot.slane %v796, 5
      %v799 = vor.u32 %v795, %v798
      %v800 = vrot.slane %v799, 4
      %v802 = vshll.u32 %v735, 16
      %v804 = vrot.slane %v802, 5
      %v805 = vsel %vm791, %v800, %v804
      %v806 = vshrl.u32 %v735, 16
      %v808 = vrot.slane %v806, 4
      %v809 = vor.u32 %v808, %v804
      %v810 = vrot.slane %v809, 4
      %v812 = vshll.u32 %v736, 16
      %v814 = vrot.slane %v812, 5
      %v815 = vsel %vm791, %v810, %v814
      %v817 = vshrl.u32 %v737, 16
      %v819 = vrot.slane %v817, 4
      %v820 = vshll.u32 %v737, 16
      %v822 = vrot.slane %v820, 5
      %v823 = vor.u32 %v819, %v822
      %v824 = vrot.slane %v823, 4
      %v826 = vshll.u32 %v738, 16
      %v828 = vrot.slane %v826, 5
      %v829 = vsel %vm791, %v824, %v828
      %v830 = vshrl.u32 %v738, 16
      %v832 = vrot.slane %v830, 4
      %v833 = vor.u32 %v832, %v828
      %v834 = vrot.slane %v833, 4
      %v836 = vshll.u32 %v739, 16
      %v838 = vrot.slane %v836, 5
      %v839 = vsel %vm791, %v834, %v838
      %v841 = vshrl.u32 %v740, 16
      %v843 = vrot.slane %v841, 4
      %v844 = vshll.u32 %v740, 16
      %v846 = vrot.slane %v844, 5
      %v847 = vor.u32 %v843, %v846
      %v848 = vrot.slane %v847, 4
      %v850 = vshll.u32 %v741, 16
      %v852 = vrot.slane %v850, 5
      %v853 = vsel %vm791, %v848, %v852
      %v854 = vshrl.u32 %v741, 16
      %v856 = vrot.slane %v854, 4
      %v857 = vor.u32 %v856, %v852
      %v858 = vrot.slane %v857, 4
      %v860 = vshll.u32 %v742, 16
      %v862 = vrot.slane %v860, 5
      %v863 = vsel %vm791, %v858, %v862
      %v865 = vshrl.u32 %v743, 16
      %v867 = vrot.slane %v865, 4
      %v868 = vshll.u32 %v743, 16
      %v870 = vrot.slane %v868, 5
      %v871 = vor.u32 %v867, %v870
      %v872 = vrot.slane %v871, 4
      %v874 = vshll.u32 %v744, 16
      %v876 = vrot.slane %v874, 5
      %v877 = vsel %vm791, %v872, %v876
      %v878 = vshrl.u32 %v744, 16
      %v880 = vrot.slane %v878, 4
      %v881 = vor.u32 %v880, %v876
      %v882 = vrot.slane %v881, 4
      %v884 = vshll.u32 %v745, 16
      %v886 = vrot.slane %v884, 5
      %v887 = vsel %vm791, %v882, %v886
      %v889 = vshrl.u32 %v746, 16
      %v891 = vrot.slane %v889, 4
      %v892 = vshll.u32 %v746, 16
      %v894 = vrot.slane %v892, 5
      %v895 = vor.u32 %v891, %v894
      %v896 = vrot.slane %v895, 4
      %v898 = vshll.u32 %v747, 16
      %v900 = vrot.slane %v898, 5
      %v901 = vsel %vm791, %v896, %v900
      %v902 = vshrl.u32 %v747, 16
      %v904 = vrot.slane %v902, 4
      %v905 = vor.u32 %v904, %v900
      %v906 = vrot.slane %v905, 4
      %v908 = vshll.u32 %v748, 16
      %v910 = vrot.slane %v908, 5
      %v911 = vsel %vm791, %v906, %v910
      %v913 = vshrl.u32 %v749, 16
      %v915 = vrot.slane %v913, 4
      %v916 = vshll.u32 %v749, 16
      %v918 = vrot.slane %v916, 5
      %v919 = vor.u32 %v915, %v918
      %v920 = vrot.slane %v919, 4
      %v922 = vshll.u32 %v750, 16
      %v924 = vrot.slane %v922, 5
      %v925 = vsel %vm791, %v920, %v924
      %v926 = vshrl.u32 %v750, 16
      %v928 = vrot.slane %v926, 4
      %v929 = vor.u32 %v928, %v924
      %v930 = vrot.slane %v929, 4
      %v932 = vshll.u32 %v751, 16
      %v934 = vrot.slane %v932, 5
      %v935 = vsel %vm791, %v930, %v934
      %v937 = vshrl.u32 %v752, 16
      %v939 = vrot.slane %v937, 4
      %v940 = vshll.u32 %v752, 16
      %v942 = vrot.slane %v940, 5
      %v943 = vor.u32 %v939, %v942
      %v944 = vrot.slane %v943, 4
      %v946 = vshll.u32 %v753, 16
      %v948 = vrot.slane %v946, 5
      %v949 = vsel %vm791, %v944, %v948
      %v950 = vshrl.u32 %v753, 16
      %v952 = vrot.slane %v950, 4
      %v953 = vor.u32 %v952, %v948
      %v954 = vrot.slane %v953, 4
      %v956 = vshll.u32 %v754, 16
      %v958 = vrot.slane %v956, 5
      %v959 = vsel %vm791, %v954, %v958
      %v961 = vshrl.u32 %v755, 16
      %v963 = vrot.slane %v961, 4
      %v964 = vshll.u32 %v755, 16
      %v966 = vrot.slane %v964, 5
      %v967 = vor.u32 %v963, %v966
      %v968 = vrot.slane %v967, 4
      %v970 = vshll.u32 %v756, 16
      %v972 = vrot.slane %v970, 5
      %v973 = vsel %vm791, %v968, %v972
      %v974 = vshrl.u32 %v756, 16
      %v976 = vrot.slane %v974, 4
      %v977 = vor.u32 %v976, %v972
      %v978 = vrot.slane %v977, 4
      %v980 = vshll.u32 %v757, 16
      %v982 = vrot.slane %v980, 5
      %v983 = vsel %vm791, %v978, %v982
      %v985 = vshrl.u32 %v758, 16
      %v987 = vrot.slane %v985, 4
      %v988 = vshll.u32 %v758, 16
      %v990 = vrot.slane %v988, 5
      %v991 = vor.u32 %v987, %v990
      %v992 = vrot.slane %v991, 4
      %v994 = vshll.u32 %v759, 16
      %v996 = vrot.slane %v994, 5
      %v997 = vsel %vm791, %v992, %v996
      %v998 = vshrl.u32 %v759, 16
      %v1000 = vrot.slane %v998, 4
      %v1001 = vor.u32 %v1000, %v996
      %v1002 = vrot.slane %v1001, 4
      %v1004 = vshll.u32 %v760, 16
      %v1006 = vrot.slane %v1004, 5
      %v1007 = vsel %vm791, %v1002, %v1006
      %v1009 = vshrl.u32 %v761, 16
      %v1011 = vrot.slane %v1009, 4
      %v1012 = vshll.u32 %v761, 16
      %v1014 = vrot.slane %v1012, 5
      %v1015 = vor.u32 %v1011, %v1014
      %v1016 = vrot.slane %v1015, 4
      %v1018 = vshll.u32 %v762, 16
      %v1020 = vrot.slane %v1018, 5
      %v1021 = vsel %vm791, %v1016, %v1020
      %v1022 = vshrl.u32 %v762, 16
      %v1024 = vrot.slane %v1022, 4
      %v1025 = vor.u32 %v1024, %v1020
      %v1026 = vrot.slane %v1025, 4
      %v1028 = vshll.u32 %v763, 16
      %v1030 = vrot.slane %v1028, 5
      %v1031 = vsel %vm791, %v1026, %v1030
      %v1033 = vshrl.u32 %v764, 16
      %v1035 = vrot.slane %v1033, 4
      %v1036 = vshll.u32 %v764, 16
      %v1038 = vrot.slane %v1036, 5
      %v1039 = vor.u32 %v1035, %v1038
      %v1040 = vrot.slane %v1039, 4
      %v1042 = vshll.u32 %v765, 16
      %v1044 = vrot.slane %v1042, 5
      %v1045 = vsel %vm791, %v1040, %v1044
      %v1046 = vshrl.u32 %v765, 16
      %v1048 = vrot.slane %v1046, 4
      %v1049 = vor.u32 %v1048, %v1044
      %v1050 = vrot.slane %v1049, 4
      %v1052 = vshll.u32 %v766, 16
      %v1054 = vrot.slane %v1052, 5
      %v1055 = vsel %vm791, %v1050, %v1054
      %v1057 = vshrl.u32 %v767, 16
      %v1059 = vrot.slane %v1057, 4
      %v1060 = vshll.u32 %v767, 16
      %v1062 = vrot.slane %v1060, 5
      %v1063 = vor.u32 %v1059, %v1062
      %v1064 = vrot.slane %v1063, 4
      %v1066 = vshll.u32 %v768, 16
      %v1068 = vrot.slane %v1066, 5
      %v1069 = vsel %vm791, %v1064, %v1068
      %v1070 = vshrl.u32 %v768, 16
      %v1072 = vrot.slane %v1070, 4
      %v1073 = vor.u32 %v1072, %v1068
      %v1074 = vrot.slane %v1073, 4
      %v1076 = vshll.u32 %v769, 16
      %v1078 = vrot.slane %v1076, 5
      %v1079 = vsel %vm791, %v1074, %v1078
      %v1081 = vshrl.u32 %v770, 16
      %v1083 = vrot.slane %v1081, 4
      %v1084 = vshll.u32 %v770, 16
      %v1086 = vrot.slane %v1084, 5
      %v1087 = vor.u32 %v1083, %v1086
      %v1088 = vrot.slane %v1087, 4
      %v1090 = vshll.u32 %v771, 16
      %v1092 = vrot.slane %v1090, 5
      %v1093 = vsel %vm791, %v1088, %v1092
      %v1094 = vshrl.u32 %v771, 16
      %v1096 = vrot.slane %v1094, 4
      %v1097 = vor.u32 %v1096, %v1092
      %v1098 = vrot.slane %v1097, 4
      %v1100 = vshll.u32 %v772, 16
      %v1102 = vrot.slane %v1100, 5
      %v1103 = vsel %vm791, %v1098, %v1102
      %v1105 = vshrl.u32 %v773, 16
      %v1107 = vrot.slane %v1105, 4
      %v1108 = vshll.u32 %v773, 16
      %v1110 = vrot.slane %v1108, 5
      %v1111 = vor.u32 %v1107, %v1110
      %v1112 = vrot.slane %v1111, 4
      %v1114 = vshll.u32 %v774, 16
      %v1116 = vrot.slane %v1114, 5
      %v1117 = vsel %vm791, %v1112, %v1116
      %v1118 = vshrl.u32 %v774, 16
      %v1120 = vrot.slane %v1118, 4
      %v1121 = vor.u32 %v1120, %v1116
      %v1122 = vrot.slane %v1121, 4
      %v1124 = vshll.u32 %v775, 16
      %v1126 = vrot.slane %v1124, 5
      %v1127 = vsel %vm791, %v1122, %v1126
      %v1129 = vshrl.u32 %v776, 16
      %v1131 = vrot.slane %v1129, 4
      %v1132 = vshll.u32 %v776, 16
      %v1134 = vrot.slane %v1132, 5
      %v1135 = vor.u32 %v1131, %v1134
      %v1136 = vrot.slane %v1135, 4
      %v1138 = vshll.u32 %v777, 16
      %v1140 = vrot.slane %v1138, 5
      %v1141 = vsel %vm791, %v1136, %v1140
      %v1142 = vshrl.u32 %v777, 16
      %v1144 = vrot.slane %v1142, 4
      %v1145 = vor.u32 %v1144, %v1140
      %v1146 = vrot.slane %v1145, 4
      %v1148 = vshll.u32 %v778, 16
      %v1150 = vrot.slane %v1148, 5
      %v1151 = vsel %vm791, %v1146, %v1150
      %v1153 = vshrl.u32 %v779, 16
      %v1155 = vrot.slane %v1153, 4
      %v1156 = vshll.u32 %v779, 16
      %v1158 = vrot.slane %v1156, 5
      %v1159 = vor.u32 %v1155, %v1158
      %v1160 = vrot.slane %v1159, 4
      %v1162 = vshll.u32 %v780, 16
      %v1164 = vrot.slane %v1162, 5
      %v1165 = vsel %vm791, %v1160, %v1164
      %v1166 = vshrl.u32 %v780, 16
      %v1168 = vrot.slane %v1166, 4
      %v1169 = vor.u32 %v1168, %v1164
      %v1170 = vrot.slane %v1169, 4
      %v1172 = vshll.u32 %v781, 16
      %v1174 = vrot.slane %v1172, 5
      %v1175 = vsel %vm791, %v1170, %v1174
      %s1176 = scalar_lea.vmem %s1, 4
      %v1177 = vld [vmem:[%s1176] sm:$0xf]
      %v1178 = vunpack.c.l.b16 %v805
      %v1179 = vunpack.c.l.b16 %v815
      %v1180 = vunpack.c.l.b16 %v829
      %v1181 = vunpack.c.l.b16 %v839
      %v1182 = vunpack.c.l.b16 %v853
      %v1183 = vunpack.c.l.b16 %v863
      %v1184 = vunpack.c.l.b16 %v877
      %v1185 = vunpack.c.l.b16 %v887
      %v1186 = vunpack.c.l.b16 %v901
      %v1187 = vunpack.c.l.b16 %v911
      %v1188 = vunpack.c.l.b16 %v925
      %v1189 = vunpack.c.l.b16 %v935
      %v1190 = vunpack.c.l.b16 %v949
      %v1191 = vunpack.c.l.b16 %v959
      %v1192 = vunpack.c.l.b16 %v973
      %v1193 = vunpack.c.l.b16 %v983
      %v1194 = vunpack.c.l.b16 %v997
      %v1195 = vunpack.c.l.b16 %v1007
      %v1196 = vunpack.c.l.b16 %v1021
      %v1197 = vunpack.c.l.b16 %v1031
      %v1198 = vunpack.c.l.b16 %v1045
      %v1199 = vunpack.c.l.b16 %v1055
      %v1200 = vunpack.c.l.b16 %v1069
      %v1201 = vunpack.c.l.b16 %v1079
      %v1202 = vunpack.c.l.b16 %v1093
      %v1203 = vunpack.c.l.b16 %v1103
      %v1204 = vunpack.c.l.b16 %v1117
      %v1205 = vunpack.c.l.b16 %v1127
      %v1206 = vunpack.c.l.b16 %v1141
      %v1207 = vunpack.c.l.b16 %v1151
      %v1208 = vunpack.c.l.b16 %v1165
      %v1209 = vunpack.c.l.b16 %v1175
      %v1210 = vpack.c.b16 %v1179, %v1178
      %v1211 = vpack.c.b16 %v1181, %v1180
      %v1212 = vpack.c.b16 %v1183, %v1182
      %v1213 = vpack.c.b16 %v1185, %v1184
      %v1214 = vpack.c.b16 %v1187, %v1186
      %v1215 = vpack.c.b16 %v1189, %v1188
      %v1216 = vpack.c.b16 %v1191, %v1190
      %v1217 = vpack.c.b16 %v1193, %v1192
      %v1218 = vpack.c.b16 %v1195, %v1194
      %v1219 = vpack.c.b16 %v1197, %v1196
      %v1220 = vpack.c.b16 %v1199, %v1198
      %v1221 = vpack.c.b16 %v1201, %v1200
      %v1222 = vpack.c.b16 %v1203, %v1202
      %v1223 = vpack.c.b16 %v1205, %v1204
      %v1224 = vpack.c.b16 %v1207, %v1206
      %v1225 = vpack.c.b16 %v1209, %v1208
      %vm1226 = vcmask 64512
      %v1228 = vsel %vm1226, %v1210, 0
      %v1231 = vsel %vm1226, %v1211, 0
      %v1234 = vsel %vm1226, %v1212, 0
      %v1237 = vsel %vm1226, %v1213, 0
      %v1240 = vsel %vm1226, %v1214, 0
      %v1243 = vsel %vm1226, %v1215, 0
      %v1246 = vsel %vm1226, %v1216, 0
      %v1249 = vsel %vm1226, %v1217, 0
      %v1252 = vsel %vm1226, %v1218, 0
      %v1255 = vsel %vm1226, %v1219, 0
      %v1258 = vsel %vm1226, %v1220, 0
      %v1261 = vsel %vm1226, %v1221, 0
      %v1264 = vsel %vm1226, %v1222, 0
      %v1267 = vsel %vm1226, %v1223, 0
      %v1270 = vsel %vm1226, %v1224, 0
      %v1273 = vsel %vm1226, %v1225, 0
      %vm1275 = vcmask 1043456
      %v1277 = vsel %vm1275, %v1177, 0
      %1279 = vmatpush.bf16.msra.mxu0 0
      %1280 = vmatpush.bf16.msra.mxu0 0
      %1281 = vmatpush.bf16.msra.mxu0 0
      %1282 = vmatpush.bf16.msra.mxu0 0
      %1283 = vmatpush.bf16.msra.mxu0 0
      %1284 = vmatpush.bf16.msra.mxu0 0
      %1285 = vmatpush.bf16.msra.mxu0 0
      %1286 = vmatpush.bf16.msra.mxu0 %v1277
      %1287 = vmatmul.bf16.gmra.mxu0 %v1228
      %v1288 = vpop.f32.mrf.mxu0
      %v1289 = vadd.f32 0.0, %v1288
      %v1290 = vpop.f32.mrf.mxu0
      %v1291 = vadd.f32 0.0, %v1290
      %1292 = vmatmul.bf16.gmra.mxu0 %v1231
      %v1293 = vpop.f32.mrf.mxu0
      %v1294 = vadd.f32 0.0, %v1293
      %v1295 = vpop.f32.mrf.mxu0
      %v1296 = vadd.f32 0.0, %v1295
      %1297 = vmatmul.bf16.gmra.mxu0 %v1234
      %v1298 = vpop.f32.mrf.mxu0
      %v1299 = vadd.f32 0.0, %v1298
      %v1300 = vpop.f32.mrf.mxu0
      %v1301 = vadd.f32 0.0, %v1300
      %1302 = vmatmul.bf16.gmra.mxu0 %v1237
      %v1303 = vpop.f32.mrf.mxu0
      %v1304 = vadd.f32 0.0, %v1303
      %v1305 = vpop.f32.mrf.mxu0
      %v1306 = vadd.f32 0.0, %v1305
      %1307 = vmatmul.bf16.gmra.mxu0 %v1240
      %v1308 = vpop.f32.mrf.mxu0
      %v1309 = vadd.f32 0.0, %v1308
      %v1310 = vpop.f32.mrf.mxu0
      %v1311 = vadd.f32 0.0, %v1310
      %1312 = vmatmul.bf16.gmra.mxu0 %v1243
      %v1313 = vpop.f32.mrf.mxu0
      %v1314 = vadd.f32 0.0, %v1313
      %v1315 = vpop.f32.mrf.mxu0
      %v1316 = vadd.f32 0.0, %v1315
      %1317 = vmatmul.bf16.gmra.mxu0 %v1246
      %v1318 = vpop.f32.mrf.mxu0
      %v1319 = vadd.f32 0.0, %v1318
      %v1320 = vpop.f32.mrf.mxu0
      %v1321 = vadd.f32 0.0, %v1320
      %1322 = vmatmul.bf16.gmra.mxu0 %v1249
      %v1323 = vpop.f32.mrf.mxu0
      %v1324 = vadd.f32 0.0, %v1323
      %v1325 = vpop.f32.mrf.mxu0
      %v1326 = vadd.f32 0.0, %v1325
      %1327 = vmatmul.bf16.gmra.mxu0 %v1252
      %v1328 = vpop.f32.mrf.mxu0
      %v1329 = vadd.f32 0.0, %v1328
      %v1330 = vpop.f32.mrf.mxu0
      %v1331 = vadd.f32 0.0, %v1330
      %1332 = vmatmul.bf16.gmra.mxu0 %v1255
      %v1333 = vpop.f32.mrf.mxu0
      %v1334 = vadd.f32 0.0, %v1333
      %v1335 = vpop.f32.mrf.mxu0
      %v1336 = vadd.f32 0.0, %v1335
      %1337 = vmatmul.bf16.gmra.mxu0 %v1258
      %v1338 = vpop.f32.mrf.mxu0
      %v1339 = vadd.f32 0.0, %v1338
      %v1340 = vpop.f32.mrf.mxu0
      %v1341 = vadd.f32 0.0, %v1340
      %1342 = vmatmul.bf16.gmra.mxu0 %v1261
      %v1343 = vpop.f32.mrf.mxu0
      %v1344 = vadd.f32 0.0, %v1343
      %v1345 = vpop.f32.mrf.mxu0
      %v1346 = vadd.f32 0.0, %v1345
      %1347 = vmatmul.bf16.gmra.mxu0 %v1264
      %v1348 = vpop.f32.mrf.mxu0
      %v1349 = vadd.f32 0.0, %v1348
      %v1350 = vpop.f32.mrf.mxu0
      %v1351 = vadd.f32 0.0, %v1350
      %1352 = vmatmul.bf16.gmra.mxu0 %v1267
      %v1353 = vpop.f32.mrf.mxu0
      %v1354 = vadd.f32 0.0, %v1353
      %v1355 = vpop.f32.mrf.mxu0
      %v1356 = vadd.f32 0.0, %v1355
      %1357 = vmatmul.bf16.gmra.mxu0 %v1270
      %v1358 = vpop.f32.mrf.mxu0
      %v1359 = vadd.f32 0.0, %v1358
      %v1360 = vpop.f32.mrf.mxu0
      %v1361 = vadd.f32 0.0, %v1360
      %1362 = vmatmul.bf16.gmra.mxu0 %v1273
      %v1363 = vpop.f32.mrf.mxu0
      %v1364 = vadd.f32 0.0, %v1363
      %v1365 = vpop.f32.mrf.mxu0
      %v1366 = vadd.f32 0.0, %v1365
      %1367 = vdwg.mxu0
      %v1400 = vunpack.c.l.b16 %v734
      %v1401 = vunpack.c.l.b16 %v735
      %v1402 = vunpack.c.l.b16 %v737
      %v1403 = vunpack.c.l.b16 %v738
      %v1404 = vunpack.c.l.b16 %v740
      %v1405 = vunpack.c.l.b16 %v741
      %v1406 = vunpack.c.l.b16 %v743
      %v1407 = vunpack.c.l.b16 %v744
      %v1408 = vunpack.c.l.b16 %v746
      %v1409 = vunpack.c.l.b16 %v747
      %v1410 = vunpack.c.l.b16 %v749
      %v1411 = vunpack.c.l.b16 %v750
      %v1412 = vunpack.c.l.b16 %v752
      %v1413 = vunpack.c.l.b16 %v753
      %v1414 = vunpack.c.l.b16 %v755
      %v1415 = vunpack.c.l.b16 %v756
      %v1416 = vunpack.c.l.b16 %v758
      %v1417 = vunpack.c.l.b16 %v759
      %v1418 = vunpack.c.l.b16 %v761
      %v1419 = vunpack.c.l.b16 %v762
      %v1420 = vunpack.c.l.b16 %v764
      %v1421 = vunpack.c.l.b16 %v765
      %v1422 = vunpack.c.l.b16 %v767
      %v1423 = vunpack.c.l.b16 %v768
      %v1424 = vunpack.c.l.b16 %v770
      %v1425 = vunpack.c.l.b16 %v771
      %v1426 = vunpack.c.l.b16 %v773
      %v1427 = vunpack.c.l.b16 %v774
      %v1428 = vunpack.c.l.b16 %v776
      %v1429 = vunpack.c.l.b16 %v777
      %v1430 = vunpack.c.l.b16 %v779
      %v1431 = vunpack.c.l.b16 %v780
      %v1432 = vpack.c.b16 %v1401, %v1400
      %v1433 = vpack.c.b16 %v1403, %v1402
      %v1434 = vpack.c.b16 %v1405, %v1404
      %v1435 = vpack.c.b16 %v1407, %v1406
      %v1436 = vpack.c.b16 %v1409, %v1408
      %v1437 = vpack.c.b16 %v1411, %v1410
      %v1438 = vpack.c.b16 %v1413, %v1412
      %v1439 = vpack.c.b16 %v1415, %v1414
      %v1440 = vpack.c.b16 %v1417, %v1416
      %v1441 = vpack.c.b16 %v1419, %v1418
      %v1442 = vpack.c.b16 %v1421, %v1420
      %v1443 = vpack.c.b16 %v1423, %v1422
      %v1444 = vpack.c.b16 %v1425, %v1424
      %v1445 = vpack.c.b16 %v1427, %v1426
      %v1446 = vpack.c.b16 %v1429, %v1428
      %v1447 = vpack.c.b16 %v1431, %v1430
      %v1449 = vsel %vm1226, %v1432, 0
      %v1452 = vsel %vm1226, %v1433, 0
      %v1455 = vsel %vm1226, %v1434, 0
      %v1458 = vsel %vm1226, %v1435, 0
      %v1461 = vsel %vm1226, %v1436, 0
      %v1464 = vsel %vm1226, %v1437, 0
      %v1467 = vsel %vm1226, %v1438, 0
      %v1470 = vsel %vm1226, %v1439, 0
      %v1473 = vsel %vm1226, %v1440, 0
      %v1476 = vsel %vm1226, %v1441, 0
      %v1479 = vsel %vm1226, %v1442, 0
      %v1482 = vsel %vm1226, %v1443, 0
      %v1485 = vsel %vm1226, %v1444, 0
      %v1488 = vsel %vm1226, %v1445, 0
      %v1491 = vsel %vm1226, %v1446, 0
      %v1494 = vsel %vm1226, %v1447, 0
      %v1497 = vsel %vm1275, %v788, 0
      %1499 = vmatpush.bf16.msra.mxu0 0
      %1500 = vmatpush.bf16.msra.mxu0 0
      %1501 = vmatpush.bf16.msra.mxu0 0
      %1502 = vmatpush.bf16.msra.mxu0 0
      %1503 = vmatpush.bf16.msra.mxu0 0
      %1504 = vmatpush.bf16.msra.mxu0 0
      %1505 = vmatpush.bf16.msra.mxu0 0
      %1506 = vmatpush.bf16.msra.mxu0 %v1497
      %1507 = vmatmul.bf16.gmra.mxu0 %v1449
      %v1508 = vpop.f32.mrf.mxu0
      %v1509 = vadd.f32 %v1289, %v1508
      %v1510 = vpop.f32.mrf.mxu0
      %v1511 = vadd.f32 %v1291, %v1510
      %1512 = vmatmul.bf16.gmra.mxu0 %v1452
      %v1513 = vpop.f32.mrf.mxu0
      %v1514 = vadd.f32 %v1294, %v1513
      %v1515 = vpop.f32.mrf.mxu0
      %v1516 = vadd.f32 %v1296, %v1515
      %1517 = vmatmul.bf16.gmra.mxu0 %v1455
      %v1518 = vpop.f32.mrf.mxu0
      %v1519 = vadd.f32 %v1299, %v1518
      %v1520 = vpop.f32.mrf.mxu0
      %v1521 = vadd.f32 %v1301, %v1520
      %1522 = vmatmul.bf16.gmra.mxu0 %v1458
      %v1523 = vpop.f32.mrf.mxu0
      %v1524 = vadd.f32 %v1304, %v1523
      %v1525 = vpop.f32.mrf.mxu0
      %v1526 = vadd.f32 %v1306, %v1525
      %1527 = vmatmul.bf16.gmra.mxu0 %v1461
      %v1528 = vpop.f32.mrf.mxu0
      %v1529 = vadd.f32 %v1309, %v1528
      %v1530 = vpop.f32.mrf.mxu0
      %v1531 = vadd.f32 %v1311, %v1530
      %1532 = vmatmul.bf16.gmra.mxu0 %v1464
      %v1533 = vpop.f32.mrf.mxu0
      %v1534 = vadd.f32 %v1314, %v1533
      %v1535 = vpop.f32.mrf.mxu0
      %v1536 = vadd.f32 %v1316, %v1535
      %1537 = vmatmul.bf16.gmra.mxu0 %v1467
      %v1538 = vpop.f32.mrf.mxu0
      %v1539 = vadd.f32 %v1319, %v1538
      %v1540 = vpop.f32.mrf.mxu0
      %v1541 = vadd.f32 %v1321, %v1540
      %1542 = vmatmul.bf16.gmra.mxu0 %v1470
      %v1543 = vpop.f32.mrf.mxu0
      %v1544 = vadd.f32 %v1324, %v1543
      %v1545 = vpop.f32.mrf.mxu0
      %v1546 = vadd.f32 %v1326, %v1545
      %1547 = vmatmul.bf16.gmra.mxu0 %v1473
      %v1548 = vpop.f32.mrf.mxu0
      %v1549 = vadd.f32 %v1329, %v1548
      %v1550 = vpop.f32.mrf.mxu0
      %v1551 = vadd.f32 %v1331, %v1550
      %1552 = vmatmul.bf16.gmra.mxu0 %v1476
      %v1553 = vpop.f32.mrf.mxu0
      %v1554 = vadd.f32 %v1334, %v1553
      %v1555 = vpop.f32.mrf.mxu0
      %v1556 = vadd.f32 %v1336, %v1555
      %1557 = vmatmul.bf16.gmra.mxu0 %v1479
      %v1558 = vpop.f32.mrf.mxu0
      %v1559 = vadd.f32 %v1339, %v1558
      %v1560 = vpop.f32.mrf.mxu0
      %v1561 = vadd.f32 %v1341, %v1560
      %1562 = vmatmul.bf16.gmra.mxu0 %v1482
      %v1563 = vpop.f32.mrf.mxu0
      %v1564 = vadd.f32 %v1344, %v1563
      %v1565 = vpop.f32.mrf.mxu0
      %v1566 = vadd.f32 %v1346, %v1565
      %1567 = vmatmul.bf16.gmra.mxu0 %v1485
      %v1568 = vpop.f32.mrf.mxu0
      %v1569 = vadd.f32 %v1349, %v1568
      %v1570 = vpop.f32.mrf.mxu0
      %v1571 = vadd.f32 %v1351, %v1570
      %1572 = vmatmul.bf16.gmra.mxu0 %v1488
      %v1573 = vpop.f32.mrf.mxu0
      %v1574 = vadd.f32 %v1354, %v1573
      %v1575 = vpop.f32.mrf.mxu0
      %v1576 = vadd.f32 %v1356, %v1575
      %1577 = vmatmul.bf16.gmra.mxu0 %v1491
      %v1578 = vpop.f32.mrf.mxu0
      %v1579 = vadd.f32 %v1359, %v1578
      %v1580 = vpop.f32.mrf.mxu0
      %v1581 = vadd.f32 %v1361, %v1580
      %1582 = vmatmul.bf16.gmra.mxu0 %v1494
      %v1583 = vpop.f32.mrf.mxu0
      %v1584 = vadd.f32 %v1364, %v1583
      %v1585 = vpop.f32.mrf.mxu0
      %v1586 = vadd.f32 %v1366, %v1585
      %1587 = vdwg.mxu0
      %vm1604 = vcmask 1042432
      %vm1605 = vcmask 1046532
      %vm1606 = vmor %vm1604, %vm1605
      %v1607 = vrot.slane %v734, 5
      %v1608 = vrot.slane %v1607, 4
      %v1609 = vrot.slane %v735, 5
      %v1610 = vsel %vm1606, %v1608, %v1609
      %v1611 = vrot.slane %v1609, 4
      %v1612 = vrot.slane %v736, 5
      %v1613 = vsel %vm1606, %v1611, %v1612
      %v1614 = vrot.slane %v737, 5
      %v1615 = vrot.slane %v1614, 4
      %v1616 = vrot.slane %v738, 5
      %v1617 = vsel %vm1606, %v1615, %v1616
      %v1618 = vrot.slane %v1616, 4
      %v1619 = vrot.slane %v739, 5
      %v1620 = vsel %vm1606, %v1618, %v1619
      %v1621 = vrot.slane %v740, 5
      %v1622 = vrot.slane %v1621, 4
      %v1623 = vrot.slane %v741, 5
      %v1624 = vsel %vm1606, %v1622, %v1623
      %v1625 = vrot.slane %v1623, 4
      %v1626 = vrot.slane %v742, 5
      %v1627 = vsel %vm1606, %v1625, %v1626
      %v1628 = vrot.slane %v743, 5
      %v1629 = vrot.slane %v1628, 4
      %v1630 = vrot.slane %v744, 5
      %v1631 = vsel %vm1606, %v1629, %v1630
      %v1632 = vrot.slane %v1630, 4
      %v1633 = vrot.slane %v745, 5
      %v1634 = vsel %vm1606, %v1632, %v1633
      %v1635 = vrot.slane %v746, 5
      %v1636 = vrot.slane %v1635, 4
      %v1637 = vrot.slane %v747, 5
      %v1638 = vsel %vm1606, %v1636, %v1637
      %v1639 = vrot.slane %v1637, 4
      %v1640 = vrot.slane %v748, 5
      %v1641 = vsel %vm1606, %v1639, %v1640
      %v1642 = vrot.slane %v749, 5
      %v1643 = vrot.slane %v1642, 4
      %v1644 = vrot.slane %v750, 5
      %v1645 = vsel %vm1606, %v1643, %v1644
      %v1646 = vrot.slane %v1644, 4
      %v1647 = vrot.slane %v751, 5
      %v1648 = vsel %vm1606, %v1646, %v1647
      %v1649 = vrot.slane %v752, 5
      %v1650 = vrot.slane %v1649, 4
      %v1651 = vrot.slane %v753, 5
      %v1652 = vsel %vm1606, %v1650, %v1651
      %v1653 = vrot.slane %v1651, 4
      %v1654 = vrot.slane %v754, 5
      %v1655 = vsel %vm1606, %v1653, %v1654
      %v1656 = vrot.slane %v755, 5
      %v1657 = vrot.slane %v1656, 4
      %v1658 = vrot.slane %v756, 5
      %v1659 = vsel %vm1606, %v1657, %v1658
      %v1660 = vrot.slane %v1658, 4
      %v1661 = vrot.slane %v757, 5
      %v1662 = vsel %vm1606, %v1660, %v1661
      %v1663 = vrot.slane %v758, 5
      %v1664 = vrot.slane %v1663, 4
      %v1665 = vrot.slane %v759, 5
      %v1666 = vsel %vm1606, %v1664, %v1665
      %v1667 = vrot.slane %v1665, 4
      %v1668 = vrot.slane %v760, 5
      %v1669 = vsel %vm1606, %v1667, %v1668
      %v1670 = vrot.slane %v761, 5
      %v1671 = vrot.slane %v1670, 4
      %v1672 = vrot.slane %v762, 5
      %v1673 = vsel %vm1606, %v1671, %v1672
      %v1674 = vrot.slane %v1672, 4
      %v1675 = vrot.slane %v763, 5
      %v1676 = vsel %vm1606, %v1674, %v1675
      %v1677 = vrot.slane %v764, 5
      %v1678 = vrot.slane %v1677, 4
      %v1679 = vrot.slane %v765, 5
      %v1680 = vsel %vm1606, %v1678, %v1679
      %v1681 = vrot.slane %v1679, 4
      %v1682 = vrot.slane %v766, 5
      %v1683 = vsel %vm1606, %v1681, %v1682
      %v1684 = vrot.slane %v767, 5
      %v1685 = vrot.slane %v1684, 4
      %v1686 = vrot.slane %v768, 5
      %v1687 = vsel %vm1606, %v1685, %v1686
      %v1688 = vrot.slane %v1686, 4
      %v1689 = vrot.slane %v769, 5
      %v1690 = vsel %vm1606, %v1688, %v1689
      %v1691 = vrot.slane %v770, 5
      %v1692 = vrot.slane %v1691, 4
      %v1693 = vrot.slane %v771, 5
      %v1694 = vsel %vm1606, %v1692, %v1693
      %v1695 = vrot.slane %v1693, 4
      %v1696 = vrot.slane %v772, 5
      %v1697 = vsel %vm1606, %v1695, %v1696
      %v1698 = vrot.slane %v773, 5
      %v1699 = vrot.slane %v1698, 4
      %v1700 = vrot.slane %v774, 5
      %v1701 = vsel %vm1606, %v1699, %v1700
      %v1702 = vrot.slane %v1700, 4
      %v1703 = vrot.slane %v775, 5
      %v1704 = vsel %vm1606, %v1702, %v1703
      %v1705 = vrot.slane %v776, 5
      %v1706 = vrot.slane %v1705, 4
      %v1707 = vrot.slane %v777, 5
      %v1708 = vsel %vm1606, %v1706, %v1707
      %v1709 = vrot.slane %v1707, 4
      %v1710 = vrot.slane %v778, 5
      %v1711 = vsel %vm1606, %v1709, %v1710
      %v1712 = vrot.slane %v779, 5
      %v1713 = vrot.slane %v1712, 4
      %v1714 = vrot.slane %v780, 5
      %v1715 = vsel %vm1606, %v1713, %v1714
      %v1716 = vrot.slane %v1714, 4
      %v1717 = vrot.slane %v781, 5
      %v1718 = vsel %vm1606, %v1716, %v1717
      %s1719 = scalar_lea.vmem %s1, 8
      %v1720 = vld [vmem:[%s1719] sm:$0xf]
      %v1721 = vunpack.c.l.b16 %v1610
      %v1722 = vunpack.c.l.b16 %v1613
      %v1723 = vunpack.c.l.b16 %v1617
      %v1724 = vunpack.c.l.b16 %v1620
      %v1725 = vunpack.c.l.b16 %v1624
      %v1726 = vunpack.c.l.b16 %v1627
      %v1727 = vunpack.c.l.b16 %v1631
      %v1728 = vunpack.c.l.b16 %v1634
      %v1729 = vunpack.c.l.b16 %v1638
      %v1730 = vunpack.c.l.b16 %v1641
      %v1731 = vunpack.c.l.b16 %v1645
      %v1732 = vunpack.c.l.b16 %v1648
      %v1733 = vunpack.c.l.b16 %v1652
      %v1734 = vunpack.c.l.b16 %v1655
      %v1735 = vunpack.c.l.b16 %v1659
      %v1736 = vunpack.c.l.b16 %v1662
      %v1737 = vunpack.c.l.b16 %v1666
      %v1738 = vunpack.c.l.b16 %v1669
      %v1739 = vunpack.c.l.b16 %v1673
      %v1740 = vunpack.c.l.b16 %v1676
      %v1741 = vunpack.c.l.b16 %v1680
      %v1742 = vunpack.c.l.b16 %v1683
      %v1743 = vunpack.c.l.b16 %v1687
      %v1744 = vunpack.c.l.b16 %v1690
      %v1745 = vunpack.c.l.b16 %v1694
      %v1746 = vunpack.c.l.b16 %v1697
      %v1747 = vunpack.c.l.b16 %v1701
      %v1748 = vunpack.c.l.b16 %v1704
      %v1749 = vunpack.c.l.b16 %v1708
      %v1750 = vunpack.c.l.b16 %v1711
      %v1751 = vunpack.c.l.b16 %v1715
      %v1752 = vunpack.c.l.b16 %v1718
      %v1753 = vpack.c.b16 %v1722, %v1721
      %v1754 = vpack.c.b16 %v1724, %v1723
      %v1755 = vpack.c.b16 %v1726, %v1725
      %v1756 = vpack.c.b16 %v1728, %v1727
      %v1757 = vpack.c.b16 %v1730, %v1729
      %v1758 = vpack.c.b16 %v1732, %v1731
      %v1759 = vpack.c.b16 %v1734, %v1733
      %v1760 = vpack.c.b16 %v1736, %v1735
      %v1761 = vpack.c.b16 %v1738, %v1737
      %v1762 = vpack.c.b16 %v1740, %v1739
      %v1763 = vpack.c.b16 %v1742, %v1741
      %v1764 = vpack.c.b16 %v1744, %v1743
      %v1765 = vpack.c.b16 %v1746, %v1745
      %v1766 = vpack.c.b16 %v1748, %v1747
      %v1767 = vpack.c.b16 %v1750, %v1749
      %v1768 = vpack.c.b16 %v1752, %v1751
      %v1770 = vsel %vm1226, %v1753, 0
      %v1773 = vsel %vm1226, %v1754, 0
      %v1776 = vsel %vm1226, %v1755, 0
      %v1779 = vsel %vm1226, %v1756, 0
      %v1782 = vsel %vm1226, %v1757, 0
      %v1785 = vsel %vm1226, %v1758, 0
      %v1788 = vsel %vm1226, %v1759, 0
      %v1791 = vsel %vm1226, %v1760, 0
      %v1794 = vsel %vm1226, %v1761, 0
      %v1797 = vsel %vm1226, %v1762, 0
      %v1800 = vsel %vm1226, %v1763, 0
      %v1803 = vsel %vm1226, %v1764, 0
      %v1806 = vsel %vm1226, %v1765, 0
      %v1809 = vsel %vm1226, %v1766, 0
      %v1812 = vsel %vm1226, %v1767, 0
      %v1815 = vsel %vm1226, %v1768, 0
      %v1818 = vsel %vm1275, %v1720, 0
      %1820 = vmatpush.bf16.msra.mxu0 0
      %1821 = vmatpush.bf16.msra.mxu0 0
      %1822 = vmatpush.bf16.msra.mxu0 0
      %1823 = vmatpush.bf16.msra.mxu0 0
      %1824 = vmatpush.bf16.msra.mxu0 0
      %1825 = vmatpush.bf16.msra.mxu0 0
      %1826 = vmatpush.bf16.msra.mxu0 0
      %1827 = vmatpush.bf16.msra.mxu0 %v1818
      %1828 = vmatmul.bf16.gmra.mxu0 %v1770
      %v1829 = vpop.f32.mrf.mxu0
      %v1830 = vadd.f32 0.0, %v1829
      %v1831 = vpop.f32.mrf.mxu0
      %v1832 = vadd.f32 0.0, %v1831
      %1833 = vmatmul.bf16.gmra.mxu0 %v1773
      %v1834 = vpop.f32.mrf.mxu0
      %v1835 = vadd.f32 0.0, %v1834
      %v1836 = vpop.f32.mrf.mxu0
      %v1837 = vadd.f32 0.0, %v1836
      %1838 = vmatmul.bf16.gmra.mxu0 %v1776
      %v1839 = vpop.f32.mrf.mxu0
      %v1840 = vadd.f32 0.0, %v1839
      %v1841 = vpop.f32.mrf.mxu0
      %v1842 = vadd.f32 0.0, %v1841
      %1843 = vmatmul.bf16.gmra.mxu0 %v1779
      %v1844 = vpop.f32.mrf.mxu0
      %v1845 = vadd.f32 0.0, %v1844
      %v1846 = vpop.f32.mrf.mxu0
      %v1847 = vadd.f32 0.0, %v1846
      %1848 = vmatmul.bf16.gmra.mxu0 %v1782
      %v1849 = vpop.f32.mrf.mxu0
      %v1850 = vadd.f32 0.0, %v1849
      %v1851 = vpop.f32.mrf.mxu0
      %v1852 = vadd.f32 0.0, %v1851
      %1853 = vmatmul.bf16.gmra.mxu0 %v1785
      %v1854 = vpop.f32.mrf.mxu0
      %v1855 = vadd.f32 0.0, %v1854
      %v1856 = vpop.f32.mrf.mxu0
      %v1857 = vadd.f32 0.0, %v1856
      %1858 = vmatmul.bf16.gmra.mxu0 %v1788
      %v1859 = vpop.f32.mrf.mxu0
      %v1860 = vadd.f32 0.0, %v1859
      %v1861 = vpop.f32.mrf.mxu0
      %v1862 = vadd.f32 0.0, %v1861
      %1863 = vmatmul.bf16.gmra.mxu0 %v1791
      %v1864 = vpop.f32.mrf.mxu0
      %v1865 = vadd.f32 0.0, %v1864
      %v1866 = vpop.f32.mrf.mxu0
      %v1867 = vadd.f32 0.0, %v1866
      %1868 = vmatmul.bf16.gmra.mxu0 %v1794
      %v1869 = vpop.f32.mrf.mxu0
      %v1870 = vadd.f32 0.0, %v1869
      %v1871 = vpop.f32.mrf.mxu0
      %v1872 = vadd.f32 0.0, %v1871
      %1873 = vmatmul.bf16.gmra.mxu0 %v1797
      %v1874 = vpop.f32.mrf.mxu0
      %v1875 = vadd.f32 0.0, %v1874
      %v1876 = vpop.f32.mrf.mxu0
      %v1877 = vadd.f32 0.0, %v1876
      %1878 = vmatmul.bf16.gmra.mxu0 %v1800
      %v1879 = vpop.f32.mrf.mxu0
      %v1880 = vadd.f32 0.0, %v1879
      %v1881 = vpop.f32.mrf.mxu0
      %v1882 = vadd.f32 0.0, %v1881
      %1883 = vmatmul.bf16.gmra.mxu0 %v1803
      %v1884 = vpop.f32.mrf.mxu0
      %v1885 = vadd.f32 0.0, %v1884
      %v1886 = vpop.f32.mrf.mxu0
      %v1887 = vadd.f32 0.0, %v1886
      %1888 = vmatmul.bf16.gmra.mxu0 %v1806
      %v1889 = vpop.f32.mrf.mxu0
      %v1890 = vadd.f32 0.0, %v1889
      %v1891 = vpop.f32.mrf.mxu0
      %v1892 = vadd.f32 0.0, %v1891
      %1893 = vmatmul.bf16.gmra.mxu0 %v1809
      %v1894 = vpop.f32.mrf.mxu0
      %v1895 = vadd.f32 0.0, %v1894
      %v1896 = vpop.f32.mrf.mxu0
      %v1897 = vadd.f32 0.0, %v1896
      %1898 = vmatmul.bf16.gmra.mxu0 %v1812
      %v1899 = vpop.f32.mrf.mxu0
      %v1900 = vadd.f32 0.0, %v1899
      %v1901 = vpop.f32.mrf.mxu0
      %v1902 = vadd.f32 0.0, %v1901
      %1903 = vmatmul.bf16.gmra.mxu0 %v1815
      %v1904 = vpop.f32.mrf.mxu0
      %v1905 = vadd.f32 0.0, %v1904
      %v1906 = vpop.f32.mrf.mxu0
      %v1907 = vadd.f32 0.0, %v1906
      %1908 = vdwg.mxu0
      %v1909 = vadd.f32 %v1509, %v1830
      %v1910 = vadd.f32 %v1511, %v1832
      %v1911 = vadd.f32 %v1514, %v1835
      %v1912 = vadd.f32 %v1516, %v1837
      %v1913 = vadd.f32 %v1519, %v1840
      %v1914 = vadd.f32 %v1521, %v1842
      %v1915 = vadd.f32 %v1524, %v1845
      %v1916 = vadd.f32 %v1526, %v1847
      %v1917 = vadd.f32 %v1529, %v1850
      %v1918 = vadd.f32 %v1531, %v1852
      %v1919 = vadd.f32 %v1534, %v1855
      %v1920 = vadd.f32 %v1536, %v1857
      %v1921 = vadd.f32 %v1539, %v1860
      %v1922 = vadd.f32 %v1541, %v1862
      %v1923 = vadd.f32 %v1544, %v1865
      %v1924 = vadd.f32 %v1546, %v1867
      %v1925 = vadd.f32 %v1549, %v1870
      %v1926 = vadd.f32 %v1551, %v1872
      %v1927 = vadd.f32 %v1554, %v1875
      %v1928 = vadd.f32 %v1556, %v1877
      %v1929 = vadd.f32 %v1559, %v1880
      %v1930 = vadd.f32 %v1561, %v1882
      %v1931 = vadd.f32 %v1564, %v1885
      %v1932 = vadd.f32 %v1566, %v1887
      %v1933 = vadd.f32 %v1569, %v1890
      %v1934 = vadd.f32 %v1571, %v1892
      %v1935 = vadd.f32 %v1574, %v1895
      %v1936 = vadd.f32 %v1576, %v1897
      %v1937 = vadd.f32 %v1579, %v1900
      %v1938 = vadd.f32 %v1581, %v1902
      %v1939 = vadd.f32 %v1584, %v1905
      %v1940 = vadd.f32 %v1586, %v1907
      %s1941 = scalar_lea.vmem %s1, 12
      %v1942 = vld [vmem:[%s1941] sm:$0xf]
      %v1945 = vunpack.c.l.b16 %v782
      %v1946 = vunpack.c.l.b16 %v783
      %v1947 = vpack.c.b16 %v1946, %v1945
      %v1949 = vsel %vm1226, %v1947, 0
      %v1952 = vsel %vm1275, %v1942, 0
      %1954 = vmatpush.bf16.msra.mxu0 0
      %1955 = vmatpush.bf16.msra.mxu0 0
      %1956 = vmatpush.bf16.msra.mxu0 0
      %1957 = vmatpush.bf16.msra.mxu0 0
      %1958 = vmatpush.bf16.msra.mxu0 0
      %1959 = vmatpush.bf16.msra.mxu0 0
      %1960 = vmatpush.bf16.msra.mxu0 0
      %1961 = vmatpush.bf16.msra.mxu0 %v1952
      %1962 = vmatmul.bf16.gmra.mxu0 %v1452
      %v1963 = vpop.f32.mrf.mxu0
      %v1964 = vadd.f32 0.0, %v1963
      %v1965 = vpop.f32.mrf.mxu0
      %v1966 = vadd.f32 0.0, %v1965
      %1967 = vmatmul.bf16.gmra.mxu0 %v1455
      %v1968 = vpop.f32.mrf.mxu0
      %v1969 = vadd.f32 0.0, %v1968
      %v1970 = vpop.f32.mrf.mxu0
      %v1971 = vadd.f32 0.0, %v1970
      %1972 = vmatmul.bf16.gmra.mxu0 %v1458
      %v1973 = vpop.f32.mrf.mxu0
      %v1974 = vadd.f32 0.0, %v1973
      %v1975 = vpop.f32.mrf.mxu0
      %v1976 = vadd.f32 0.0, %v1975
      %1977 = vmatmul.bf16.gmra.mxu0 %v1461
      %v1978 = vpop.f32.mrf.mxu0
      %v1979 = vadd.f32 0.0, %v1978
      %v1980 = vpop.f32.mrf.mxu0
      %v1981 = vadd.f32 0.0, %v1980
      %1982 = vmatmul.bf16.gmra.mxu0 %v1464
      %v1983 = vpop.f32.mrf.mxu0
      %v1984 = vadd.f32 0.0, %v1983
      %v1985 = vpop.f32.mrf.mxu0
      %v1986 = vadd.f32 0.0, %v1985
      %1987 = vmatmul.bf16.gmra.mxu0 %v1467
      %v1988 = vpop.f32.mrf.mxu0
      %v1989 = vadd.f32 0.0, %v1988
      %v1990 = vpop.f32.mrf.mxu0
      %v1991 = vadd.f32 0.0, %v1990
      %1992 = vmatmul.bf16.gmra.mxu0 %v1470
      %v1993 = vpop.f32.mrf.mxu0
      %v1994 = vadd.f32 0.0, %v1993
      %v1995 = vpop.f32.mrf.mxu0
      %v1996 = vadd.f32 0.0, %v1995
      %1997 = vmatmul.bf16.gmra.mxu0 %v1473
      %v1998 = vpop.f32.mrf.mxu0
      %v1999 = vadd.f32 0.0, %v1998
      %v2000 = vpop.f32.mrf.mxu0
      %v2001 = vadd.f32 0.0, %v2000
      %2002 = vmatmul.bf16.gmra.mxu0 %v1476
      %v2003 = vpop.f32.mrf.mxu0
      %v2004 = vadd.f32 0.0, %v2003
      %v2005 = vpop.f32.mrf.mxu0
      %v2006 = vadd.f32 0.0, %v2005
      %2007 = vmatmul.bf16.gmra.mxu0 %v1479
      %v2008 = vpop.f32.mrf.mxu0
      %v2009 = vadd.f32 0.0, %v2008
      %v2010 = vpop.f32.mrf.mxu0
      %v2011 = vadd.f32 0.0, %v2010
      %2012 = vmatmul.bf16.gmra.mxu0 %v1482
      %v2013 = vpop.f32.mrf.mxu0
      %v2014 = vadd.f32 0.0, %v2013
      %v2015 = vpop.f32.mrf.mxu0
      %v2016 = vadd.f32 0.0, %v2015
      %2017 = vmatmul.bf16.gmra.mxu0 %v1485
      %v2018 = vpop.f32.mrf.mxu0
      %v2019 = vadd.f32 0.0, %v2018
      %v2020 = vpop.f32.mrf.mxu0
      %v2021 = vadd.f32 0.0, %v2020
      %2022 = vmatmul.bf16.gmra.mxu0 %v1488
      %v2023 = vpop.f32.mrf.mxu0
      %v2024 = vadd.f32 0.0, %v2023
      %v2025 = vpop.f32.mrf.mxu0
      %v2026 = vadd.f32 0.0, %v2025
      %2027 = vmatmul.bf16.gmra.mxu0 %v1491
      %v2028 = vpop.f32.mrf.mxu0
      %v2029 = vadd.f32 0.0, %v2028
      %v2030 = vpop.f32.mrf.mxu0
      %v2031 = vadd.f32 0.0, %v2030
      %2032 = vmatmul.bf16.gmra.mxu0 %v1494
      %v2033 = vpop.f32.mrf.mxu0
      %v2034 = vadd.f32 0.0, %v2033
      %v2035 = vpop.f32.mrf.mxu0
      %v2036 = vadd.f32 0.0, %v2035
      %2037 = vmatmul.bf16.gmra.mxu0 %v1949
      %v2038 = vpop.f32.mrf.mxu0
      %v2039 = vadd.f32 0.0, %v2038
      %v2040 = vpop.f32.mrf.mxu0
      %v2041 = vadd.f32 0.0, %v2040
      %2042 = vdwg.mxu0
      %v2043 = vadd.f32 %v1909, %v1964
      %v2044 = vadd.f32 %v1910, %v1966
      %v2045 = vadd.f32 %v1911, %v1969
      %v2046 = vadd.f32 %v1912, %v1971
      %v2047 = vadd.f32 %v1913, %v1974
      %v2048 = vadd.f32 %v1914, %v1976
      %v2049 = vadd.f32 %v1915, %v1979
      %v2050 = vadd.f32 %v1916, %v1981
      %v2051 = vadd.f32 %v1917, %v1984
      %v2052 = vadd.f32 %v1918, %v1986
      %v2053 = vadd.f32 %v1919, %v1989
      %v2054 = vadd.f32 %v1920, %v1991
      %v2055 = vadd.f32 %v1921, %v1994
      %v2056 = vadd.f32 %v1922, %v1996
      %v2057 = vadd.f32 %v1923, %v1999
      %v2058 = vadd.f32 %v1924, %v2001
      %v2059 = vadd.f32 %v1925, %v2004
      %v2060 = vadd.f32 %v1926, %v2006
      %v2061 = vadd.f32 %v1927, %v2009
      %v2062 = vadd.f32 %v1928, %v2011
      %v2063 = vadd.f32 %v1929, %v2014
      %v2064 = vadd.f32 %v1930, %v2016
      %v2065 = vadd.f32 %v1931, %v2019
      %v2066 = vadd.f32 %v1932, %v2021
      %v2067 = vadd.f32 %v1933, %v2024
      %v2068 = vadd.f32 %v1934, %v2026
      %v2069 = vadd.f32 %v1935, %v2029
      %v2070 = vadd.f32 %v1936, %v2031
      %v2071 = vadd.f32 %v1937, %v2034
      %v2072 = vadd.f32 %v1938, %v2036
      %v2073 = vadd.f32 %v1939, %v2039
      %v2074 = vadd.f32 %v1940, %v2041
      %v2076 = vshrl.u32 %v782, 16
      %v2078 = vrot.slane %v2076, 4
      %v2079 = vshll.u32 %v782, 16
      %v2081 = vrot.slane %v2079, 5
      %v2082 = vor.u32 %v2078, %v2081
      %v2083 = vrot.slane %v2082, 4
      %v2085 = vshll.u32 %v783, 16
      %v2087 = vrot.slane %v2085, 5
      %v2088 = vsel %vm791, %v2083, %v2087
      %v2089 = vshrl.u32 %v783, 16
      %v2091 = vrot.slane %v2089, 4
      %v2092 = vor.u32 %v2091, %v2087
      %v2093 = vrot.slane %v2092, 4
      %v2095 = vshll.u32 %v784, 16
      %v2097 = vrot.slane %v2095, 5
      %v2098 = vsel %vm791, %v2093, %v2097
      %s2099 = scalar_lea.vmem %s1, 16
      %v2100 = vld [vmem:[%s2099] sm:$0xf]
      %v2101 = vunpack.c.l.b16 %v2088
      %v2102 = vunpack.c.l.b16 %v2098
      %v2103 = vpack.c.b16 %v2102, %v2101
      %v2105 = vsel %vm1226, %v2103, 0
      %v2108 = vsel %vm1275, %v2100, 0
      %2110 = vmatpush.bf16.msra.mxu0 0
      %2111 = vmatpush.bf16.msra.mxu0 0
      %2112 = vmatpush.bf16.msra.mxu0 0
      %2113 = vmatpush.bf16.msra.mxu0 0
      %2114 = vmatpush.bf16.msra.mxu0 0
      %2115 = vmatpush.bf16.msra.mxu0 0
      %2116 = vmatpush.bf16.msra.mxu0 0
      %2117 = vmatpush.bf16.msra.mxu0 %v2108
      %2118 = vmatmul.bf16.gmra.mxu0 %v1231
      %v2119 = vpop.f32.mrf.mxu0
      %v2120 = vadd.f32 0.0, %v2119
      %v2121 = vpop.f32.mrf.mxu0
      %v2122 = vadd.f32 0.0, %v2121
      %2123 = vmatmul.bf16.gmra.mxu0 %v1234
      %v2124 = vpop.f32.mrf.mxu0
      %v2125 = vadd.f32 0.0, %v2124
      %v2126 = vpop.f32.mrf.mxu0
      %v2127 = vadd.f32 0.0, %v2126
      %2128 = vmatmul.bf16.gmra.mxu0 %v1237
      %v2129 = vpop.f32.mrf.mxu0
      %v2130 = vadd.f32 0.0, %v2129
      %v2131 = vpop.f32.mrf.mxu0
      %v2132 = vadd.f32 0.0, %v2131
      %2133 = vmatmul.bf16.gmra.mxu0 %v1240
      %v2134 = vpop.f32.mrf.mxu0
      %v2135 = vadd.f32 0.0, %v2134
      %v2136 = vpop.f32.mrf.mxu0
      %v2137 = vadd.f32 0.0, %v2136
      %2138 = vmatmul.bf16.gmra.mxu0 %v1243
      %v2139 = vpop.f32.mrf.mxu0
      %v2140 = vadd.f32 0.0, %v2139
      %v2141 = vpop.f32.mrf.mxu0
      %v2142 = vadd.f32 0.0, %v2141
      %2143 = vmatmul.bf16.gmra.mxu0 %v1246
      %v2144 = vpop.f32.mrf.mxu0
      %v2145 = vadd.f32 0.0, %v2144
      %v2146 = vpop.f32.mrf.mxu0
      %v2147 = vadd.f32 0.0, %v2146
      %2148 = vmatmul.bf16.gmra.mxu0 %v1249
      %v2149 = vpop.f32.mrf.mxu0
      %v2150 = vadd.f32 0.0, %v2149
      %v2151 = vpop.f32.mrf.mxu0
      %v2152 = vadd.f32 0.0, %v2151
      %2153 = vmatmul.bf16.gmra.mxu0 %v1252
      %v2154 = vpop.f32.mrf.mxu0
      %v2155 = vadd.f32 0.0, %v2154
      %v2156 = vpop.f32.mrf.mxu0
      %v2157 = vadd.f32 0.0, %v2156
      %2158 = vmatmul.bf16.gmra.mxu0 %v1255
      %v2159 = vpop.f32.mrf.mxu0
      %v2160 = vadd.f32 0.0, %v2159
      %v2161 = vpop.f32.mrf.mxu0
      %v2162 = vadd.f32 0.0, %v2161
      %2163 = vmatmul.bf16.gmra.mxu0 %v1258
      %v2164 = vpop.f32.mrf.mxu0
      %v2165 = vadd.f32 0.0, %v2164
      %v2166 = vpop.f32.mrf.mxu0
      %v2167 = vadd.f32 0.0, %v2166
      %2168 = vmatmul.bf16.gmra.mxu0 %v1261
      %v2169 = vpop.f32.mrf.mxu0
      %v2170 = vadd.f32 0.0, %v2169
      %v2171 = vpop.f32.mrf.mxu0
      %v2172 = vadd.f32 0.0, %v2171
      %2173 = vmatmul.bf16.gmra.mxu0 %v1264
      %v2174 = vpop.f32.mrf.mxu0
      %v2175 = vadd.f32 0.0, %v2174
      %v2176 = vpop.f32.mrf.mxu0
      %v2177 = vadd.f32 0.0, %v2176
      %2178 = vmatmul.bf16.gmra.mxu0 %v1267
      %v2179 = vpop.f32.mrf.mxu0
      %v2180 = vadd.f32 0.0, %v2179
      %v2181 = vpop.f32.mrf.mxu0
      %v2182 = vadd.f32 0.0, %v2181
      %2183 = vmatmul.bf16.gmra.mxu0 %v1270
      %v2184 = vpop.f32.mrf.mxu0
      %v2185 = vadd.f32 0.0, %v2184
      %v2186 = vpop.f32.mrf.mxu0
      %v2187 = vadd.f32 0.0, %v2186
      %2188 = vmatmul.bf16.gmra.mxu0 %v1273
      %v2189 = vpop.f32.mrf.mxu0
      %v2190 = vadd.f32 0.0, %v2189
      %v2191 = vpop.f32.mrf.mxu0
      %v2192 = vadd.f32 0.0, %v2191
      %2193 = vmatmul.bf16.gmra.mxu0 %v2105
      %v2194 = vpop.f32.mrf.mxu0
      %v2195 = vadd.f32 0.0, %v2194
      %v2196 = vpop.f32.mrf.mxu0
      %v2197 = vadd.f32 0.0, %v2196
      %2198 = vdwg.mxu0
      %v2199 = vadd.f32 %v2043, %v2120
      %v2200 = vadd.f32 %v2044, %v2122
      %v2201 = vadd.f32 %v2045, %v2125
      %v2202 = vadd.f32 %v2046, %v2127
      %v2203 = vadd.f32 %v2047, %v2130
      %v2204 = vadd.f32 %v2048, %v2132
      %v2205 = vadd.f32 %v2049, %v2135
      %v2206 = vadd.f32 %v2050, %v2137
      %v2207 = vadd.f32 %v2051, %v2140
      %v2208 = vadd.f32 %v2052, %v2142
      %v2209 = vadd.f32 %v2053, %v2145
      %v2210 = vadd.f32 %v2054, %v2147
      %v2211 = vadd.f32 %v2055, %v2150
      %v2212 = vadd.f32 %v2056, %v2152
      %v2213 = vadd.f32 %v2057, %v2155
      %v2214 = vadd.f32 %v2058, %v2157
      %v2215 = vadd.f32 %v2059, %v2160
      %v2216 = vadd.f32 %v2060, %v2162
      %v2217 = vadd.f32 %v2061, %v2165
      %v2218 = vadd.f32 %v2062, %v2167
      %v2219 = vadd.f32 %v2063, %v2170
      %v2220 = vadd.f32 %v2064, %v2172
      %v2221 = vadd.f32 %v2065, %v2175
      %v2222 = vadd.f32 %v2066, %v2177
      %v2223 = vadd.f32 %v2067, %v2180
      %v2224 = vadd.f32 %v2068, %v2182
      %v2225 = vadd.f32 %v2069, %v2185
      %v2226 = vadd.f32 %v2070, %v2187
      %v2227 = vadd.f32 %v2071, %v2190
      %v2228 = vadd.f32 %v2072, %v2192
      %v2229 = vadd.f32 %v2073, %v2195
      %v2230 = vadd.f32 %v2074, %v2197
      %v2232 = vrot.slane %v782, 5
      %v2233 = vrot.slane %v2232, 4
      %v2234 = vrot.slane %v783, 5
      %v2235 = vsel %vm1606, %v2233, %v2234
      %v2236 = vrot.slane %v2234, 4
      %v2237 = vrot.slane %v784, 5
      %v2238 = vsel %vm1606, %v2236, %v2237
      %s2239 = scalar_lea.vmem %s1, 20
      %v2240 = vld [vmem:[%s2239] sm:$0xf]
      %v2241 = vunpack.c.l.b16 %v2235
      %v2242 = vunpack.c.l.b16 %v2238
      %v2243 = vpack.c.b16 %v2242, %v2241
      %v2245 = vsel %vm1226, %v2243, 0
      %v2248 = vsel %vm1275, %v2240, 0
      %2250 = vmatpush.bf16.msra.mxu0 0
      %2251 = vmatpush.bf16.msra.mxu0 0
      %2252 = vmatpush.bf16.msra.mxu0 0
      %2253 = vmatpush.bf16.msra.mxu0 0
      %2254 = vmatpush.bf16.msra.mxu0 0
      %2255 = vmatpush.bf16.msra.mxu0 0
      %2256 = vmatpush.bf16.msra.mxu0 0
      %2257 = vmatpush.bf16.msra.mxu0 %v2248
      %2258 = vmatmul.bf16.gmra.mxu0 %v1773
      %v2259 = vpop.f32.mrf.mxu0
      %v2260 = vadd.f32 0.0, %v2259
      %v2261 = vpop.f32.mrf.mxu0
      %v2262 = vadd.f32 0.0, %v2261
      %2263 = vmatmul.bf16.gmra.mxu0 %v1776
      %v2264 = vpop.f32.mrf.mxu0
      %v2265 = vadd.f32 0.0, %v2264
      %v2266 = vpop.f32.mrf.mxu0
      %v2267 = vadd.f32 0.0, %v2266
      %2268 = vmatmul.bf16.gmra.mxu0 %v1779
      %v2269 = vpop.f32.mrf.mxu0
      %v2270 = vadd.f32 0.0, %v2269
      %v2271 = vpop.f32.mrf.mxu0
      %v2272 = vadd.f32 0.0, %v2271
      %2273 = vmatmul.bf16.gmra.mxu0 %v1782
      %v2274 = vpop.f32.mrf.mxu0
      %v2275 = vadd.f32 0.0, %v2274
      %v2276 = vpop.f32.mrf.mxu0
      %v2277 = vadd.f32 0.0, %v2276
      %2278 = vmatmul.bf16.gmra.mxu0 %v1785
      %v2279 = vpop.f32.mrf.mxu0
      %v2280 = vadd.f32 0.0, %v2279
      %v2281 = vpop.f32.mrf.mxu0
      %v2282 = vadd.f32 0.0, %v2281
      %2283 = vmatmul.bf16.gmra.mxu0 %v1788
      %v2284 = vpop.f32.mrf.mxu0
      %v2285 = vadd.f32 0.0, %v2284
      %v2286 = vpop.f32.mrf.mxu0
      %v2287 = vadd.f32 0.0, %v2286
      %2288 = vmatmul.bf16.gmra.mxu0 %v1791
      %v2289 = vpop.f32.mrf.mxu0
      %v2290 = vadd.f32 0.0, %v2289
      %v2291 = vpop.f32.mrf.mxu0
      %v2292 = vadd.f32 0.0, %v2291
      %2293 = vmatmul.bf16.gmra.mxu0 %v1794
      %v2294 = vpop.f32.mrf.mxu0
      %v2295 = vadd.f32 0.0, %v2294
      %v2296 = vpop.f32.mrf.mxu0
      %v2297 = vadd.f32 0.0, %v2296
      %2298 = vmatmul.bf16.gmra.mxu0 %v1797
      %v2299 = vpop.f32.mrf.mxu0
      %v2300 = vadd.f32 0.0, %v2299
      %v2301 = vpop.f32.mrf.mxu0
      %v2302 = vadd.f32 0.0, %v2301
      %2303 = vmatmul.bf16.gmra.mxu0 %v1800
      %v2304 = vpop.f32.mrf.mxu0
      %v2305 = vadd.f32 0.0, %v2304
      %v2306 = vpop.f32.mrf.mxu0
      %v2307 = vadd.f32 0.0, %v2306
      %2308 = vmatmul.bf16.gmra.mxu0 %v1803
      %v2309 = vpop.f32.mrf.mxu0
      %v2310 = vadd.f32 0.0, %v2309
      %v2311 = vpop.f32.mrf.mxu0
      %v2312 = vadd.f32 0.0, %v2311
      %2313 = vmatmul.bf16.gmra.mxu0 %v1806
      %v2314 = vpop.f32.mrf.mxu0
      %v2315 = vadd.f32 0.0, %v2314
      %v2316 = vpop.f32.mrf.mxu0
      %v2317 = vadd.f32 0.0, %v2316
      %2318 = vmatmul.bf16.gmra.mxu0 %v1809
      %v2319 = vpop.f32.mrf.mxu0
      %v2320 = vadd.f32 0.0, %v2319
      %v2321 = vpop.f32.mrf.mxu0
      %v2322 = vadd.f32 0.0, %v2321
      %2323 = vmatmul.bf16.gmra.mxu0 %v1812
      %v2324 = vpop.f32.mrf.mxu0
      %v2325 = vadd.f32 0.0, %v2324
      %v2326 = vpop.f32.mrf.mxu0
      %v2327 = vadd.f32 0.0, %v2326
      %2328 = vmatmul.bf16.gmra.mxu0 %v1815
      %v2329 = vpop.f32.mrf.mxu0
      %v2330 = vadd.f32 0.0, %v2329
      %v2331 = vpop.f32.mrf.mxu0
      %v2332 = vadd.f32 0.0, %v2331
      %2333 = vmatmul.bf16.gmra.mxu0 %v2245
      %v2334 = vpop.f32.mrf.mxu0
      %v2335 = vadd.f32 0.0, %v2334
      %v2336 = vpop.f32.mrf.mxu0
      %v2337 = vadd.f32 0.0, %v2336
      %2338 = vdwg.mxu0
      %v2339 = vadd.f32 %v2199, %v2260
      %v2340 = vadd.f32 %v2200, %v2262
      %v2341 = vadd.f32 %v2201, %v2265
      %v2342 = vadd.f32 %v2202, %v2267
      %v2343 = vadd.f32 %v2203, %v2270
      %v2344 = vadd.f32 %v2204, %v2272
      %v2345 = vadd.f32 %v2205, %v2275
      %v2346 = vadd.f32 %v2206, %v2277
      %v2347 = vadd.f32 %v2207, %v2280
      %v2348 = vadd.f32 %v2208, %v2282
      %v2349 = vadd.f32 %v2209, %v2285
      %v2350 = vadd.f32 %v2210, %v2287
      %v2351 = vadd.f32 %v2211, %v2290
      %v2352 = vadd.f32 %v2212, %v2292
      %v2353 = vadd.f32 %v2213, %v2295
      %v2354 = vadd.f32 %v2214, %v2297
      %v2355 = vadd.f32 %v2215, %v2300
      %v2356 = vadd.f32 %v2216, %v2302
      %v2357 = vadd.f32 %v2217, %v2305
      %v2358 = vadd.f32 %v2218, %v2307
      %v2359 = vadd.f32 %v2219, %v2310
      %v2360 = vadd.f32 %v2220, %v2312
      %v2361 = vadd.f32 %v2221, %v2315
      %v2362 = vadd.f32 %v2222, %v2317
      %v2363 = vadd.f32 %v2223, %v2320
      %v2364 = vadd.f32 %v2224, %v2322
      %v2365 = vadd.f32 %v2225, %v2325
      %v2366 = vadd.f32 %v2226, %v2327
      %v2367 = vadd.f32 %v2227, %v2330
      %v2368 = vadd.f32 %v2228, %v2332
      %v2369 = vadd.f32 %v2229, %v2335
      %v2370 = vadd.f32 %v2230, %v2337
      %s2371 = scalar_lea.vmem %s1, 24
      %v2372 = vld [vmem:[%s2371] sm:$0xf]
      %v2375 = vunpack.c.l.b16 %v785
      %v2376 = vunpack.c.l.b16 %v786
      %v2377 = vpack.c.b16 %v2376, %v2375
      %v2379 = vsel %vm1226, %v2377, 0
      %v2382 = vsel %vm1275, %v2372, 0
      %2384 = vmatpush.bf16.msra.mxu0 0
      %2385 = vmatpush.bf16.msra.mxu0 0
      %2386 = vmatpush.bf16.msra.mxu0 0
      %2387 = vmatpush.bf16.msra.mxu0 0
      %2388 = vmatpush.bf16.msra.mxu0 0
      %2389 = vmatpush.bf16.msra.mxu0 0
      %2390 = vmatpush.bf16.msra.mxu0 0
      %2391 = vmatpush.bf16.msra.mxu0 %v2382
      %2392 = vmatmul.bf16.gmra.mxu0 %v1455
      %v2393 = vpop.f32.mrf.mxu0
      %v2394 = vadd.f32 0.0, %v2393
      %v2395 = vpop.f32.mrf.mxu0
      %v2396 = vadd.f32 0.0, %v2395
      %2397 = vmatmul.bf16.gmra.mxu0 %v1458
      %v2398 = vpop.f32.mrf.mxu0
      %v2399 = vadd.f32 0.0, %v2398
      %v2400 = vpop.f32.mrf.mxu0
      %v2401 = vadd.f32 0.0, %v2400
      %2402 = vmatmul.bf16.gmra.mxu0 %v1461
      %v2403 = vpop.f32.mrf.mxu0
      %v2404 = vadd.f32 0.0, %v2403
      %v2405 = vpop.f32.mrf.mxu0
      %v2406 = vadd.f32 0.0, %v2405
      %2407 = vmatmul.bf16.gmra.mxu0 %v1464
      %v2408 = vpop.f32.mrf.mxu0
      %v2409 = vadd.f32 0.0, %v2408
      %v2410 = vpop.f32.mrf.mxu0
      %v2411 = vadd.f32 0.0, %v2410
      %2412 = vmatmul.bf16.gmra.mxu0 %v1467
      %v2413 = vpop.f32.mrf.mxu0
      %v2414 = vadd.f32 0.0, %v2413
      %v2415 = vpop.f32.mrf.mxu0
      %v2416 = vadd.f32 0.0, %v2415
      %2417 = vmatmul.bf16.gmra.mxu0 %v1470
      %v2418 = vpop.f32.mrf.mxu0
      %v2419 = vadd.f32 0.0, %v2418
      %v2420 = vpop.f32.mrf.mxu0
      %v2421 = vadd.f32 0.0, %v2420
      %2422 = vmatmul.bf16.gmra.mxu0 %v1473
      %v2423 = vpop.f32.mrf.mxu0
      %v2424 = vadd.f32 0.0, %v2423
      %v2425 = vpop.f32.mrf.mxu0
      %v2426 = vadd.f32 0.0, %v2425
      %2427 = vmatmul.bf16.gmra.mxu0 %v1476
      %v2428 = vpop.f32.mrf.mxu0
      %v2429 = vadd.f32 0.0, %v2428
      %v2430 = vpop.f32.mrf.mxu0
      %v2431 = vadd.f32 0.0, %v2430
      %2432 = vmatmul.bf16.gmra.mxu0 %v1479
      %v2433 = vpop.f32.mrf.mxu0
      %v2434 = vadd.f32 0.0, %v2433
      %v2435 = vpop.f32.mrf.mxu0
      %v2436 = vadd.f32 0.0, %v2435
      %2437 = vmatmul.bf16.gmra.mxu0 %v1482
      %v2438 = vpop.f32.mrf.mxu0
      %v2439 = vadd.f32 0.0, %v2438
      %v2440 = vpop.f32.mrf.mxu0
      %v2441 = vadd.f32 0.0, %v2440
      %2442 = vmatmul.bf16.gmra.mxu0 %v1485
      %v2443 = vpop.f32.mrf.mxu0
      %v2444 = vadd.f32 0.0, %v2443
      %v2445 = vpop.f32.mrf.mxu0
      %v2446 = vadd.f32 0.0, %v2445
      %2447 = vmatmul.bf16.gmra.mxu0 %v1488
      %v2448 = vpop.f32.mrf.mxu0
      %v2449 = vadd.f32 0.0, %v2448
      %v2450 = vpop.f32.mrf.mxu0
      %v2451 = vadd.f32 0.0, %v2450
      %2452 = vmatmul.bf16.gmra.mxu0 %v1491
      %v2453 = vpop.f32.mrf.mxu0
      %v2454 = vadd.f32 0.0, %v2453
      %v2455 = vpop.f32.mrf.mxu0
      %v2456 = vadd.f32 0.0, %v2455
      %2457 = vmatmul.bf16.gmra.mxu0 %v1494
      %v2458 = vpop.f32.mrf.mxu0
      %v2459 = vadd.f32 0.0, %v2458
      %v2460 = vpop.f32.mrf.mxu0
      %v2461 = vadd.f32 0.0, %v2460
      %2462 = vmatmul.bf16.gmra.mxu0 %v1949
      %v2463 = vpop.f32.mrf.mxu0
      %v2464 = vadd.f32 0.0, %v2463
      %v2465 = vpop.f32.mrf.mxu0
      %v2466 = vadd.f32 0.0, %v2465
      %2467 = vmatmul.bf16.gmra.mxu0 %v2379
      %v2468 = vpop.f32.mrf.mxu0
      %v2469 = vadd.f32 0.0, %v2468
      %v2470 = vpop.f32.mrf.mxu0
      %v2471 = vadd.f32 0.0, %v2470
      %2472 = vdwg.mxu0
      %v2473 = vadd.f32 %v2339, %v2394
      %v2474 = vadd.f32 %v2340, %v2396
      %v2475 = vadd.f32 %v2341, %v2399
      %v2476 = vadd.f32 %v2342, %v2401
      %v2477 = vadd.f32 %v2343, %v2404
      %v2478 = vadd.f32 %v2344, %v2406
      %v2479 = vadd.f32 %v2345, %v2409
      %v2480 = vadd.f32 %v2346, %v2411
      %v2481 = vadd.f32 %v2347, %v2414
      %v2482 = vadd.f32 %v2348, %v2416
      %v2483 = vadd.f32 %v2349, %v2419
      %v2484 = vadd.f32 %v2350, %v2421
      %v2485 = vadd.f32 %v2351, %v2424
      %v2486 = vadd.f32 %v2352, %v2426
      %v2487 = vadd.f32 %v2353, %v2429
      %v2488 = vadd.f32 %v2354, %v2431
      %v2489 = vadd.f32 %v2355, %v2434
      %v2490 = vadd.f32 %v2356, %v2436
      %v2491 = vadd.f32 %v2357, %v2439
      %v2492 = vadd.f32 %v2358, %v2441
      %v2493 = vadd.f32 %v2359, %v2444
      %v2494 = vadd.f32 %v2360, %v2446
      %v2495 = vadd.f32 %v2361, %v2449
      %v2496 = vadd.f32 %v2362, %v2451
      %v2497 = vadd.f32 %v2363, %v2454
      %v2498 = vadd.f32 %v2364, %v2456
      %v2499 = vadd.f32 %v2365, %v2459
      %v2500 = vadd.f32 %v2366, %v2461
      %v2501 = vadd.f32 %v2367, %v2464
      %v2502 = vadd.f32 %v2368, %v2466
      %v2503 = vadd.f32 %v2369, %v2469
      %v2504 = vadd.f32 %v2370, %v2471
      %v2506 = vshrl.u32 %v785, 16
      %v2508 = vrot.slane %v2506, 4
      %v2509 = vshll.u32 %v785, 16
      %v2511 = vrot.slane %v2509, 5
      %v2512 = vor.u32 %v2508, %v2511
      %v2513 = vrot.slane %v2512, 4
      %v2515 = vshll.u32 %v786, 16
      %v2517 = vrot.slane %v2515, 5
      %v2518 = vsel %vm791, %v2513, %v2517
      %v2519 = vshrl.u32 %v786, 16
      %v2521 = vrot.slane %v2519, 4
      %v2522 = vor.u32 %v2521, %v2517
      %v2523 = vrot.slane %v2522, 4
      %v2525 = vshll.u32 %v787, 16
      %v2527 = vrot.slane %v2525, 5
      %v2528 = vsel %vm791, %v2523, %v2527
      %s2529 = scalar_lea.vmem %s1, 28
      %v2530 = vld [vmem:[%s2529] sm:$0xf]
      %v2531 = vunpack.c.l.b16 %v2518
      %v2532 = vunpack.c.l.b16 %v2528
      %v2533 = vpack.c.b16 %v2532, %v2531
      %v2535 = vsel %vm1226, %v2533, 0
      %v2538 = vsel %vm1275, %v2530, 0
      %2540 = vmatpush.bf16.msra.mxu0 0
      %2541 = vmatpush.bf16.msra.mxu0 0
      %2542 = vmatpush.bf16.msra.mxu0 0
      %2543 = vmatpush.bf16.msra.mxu0 0
      %2544 = vmatpush.bf16.msra.mxu0 0
      %2545 = vmatpush.bf16.msra.mxu0 0
      %2546 = vmatpush.bf16.msra.mxu0 0
      %2547 = vmatpush.bf16.msra.mxu0 %v2538
      %2548 = vmatmul.bf16.gmra.mxu0 %v1234
      %v2549 = vpop.f32.mrf.mxu0
      %v2550 = vadd.f32 0.0, %v2549
      %v2551 = vpop.f32.mrf.mxu0
      %v2552 = vadd.f32 0.0, %v2551
      %2553 = vmatmul.bf16.gmra.mxu0 %v1237
      %v2554 = vpop.f32.mrf.mxu0
      %v2555 = vadd.f32 0.0, %v2554
      %v2556 = vpop.f32.mrf.mxu0
      %v2557 = vadd.f32 0.0, %v2556
      %2558 = vmatmul.bf16.gmra.mxu0 %v1240
      %v2559 = vpop.f32.mrf.mxu0
      %v2560 = vadd.f32 0.0, %v2559
      %v2561 = vpop.f32.mrf.mxu0
      %v2562 = vadd.f32 0.0, %v2561
      %2563 = vmatmul.bf16.gmra.mxu0 %v1243
      %v2564 = vpop.f32.mrf.mxu0
      %v2565 = vadd.f32 0.0, %v2564
      %v2566 = vpop.f32.mrf.mxu0
      %v2567 = vadd.f32 0.0, %v2566
      %2568 = vmatmul.bf16.gmra.mxu0 %v1246
      %v2569 = vpop.f32.mrf.mxu0
      %v2570 = vadd.f32 0.0, %v2569
      %v2571 = vpop.f32.mrf.mxu0
      %v2572 = vadd.f32 0.0, %v2571
      %2573 = vmatmul.bf16.gmra.mxu0 %v1249
      %v2574 = vpop.f32.mrf.mxu0
      %v2575 = vadd.f32 0.0, %v2574
      %v2576 = vpop.f32.mrf.mxu0
      %v2577 = vadd.f32 0.0, %v2576
      %2578 = vmatmul.bf16.gmra.mxu0 %v1252
      %v2579 = vpop.f32.mrf.mxu0
      %v2580 = vadd.f32 0.0, %v2579
      %v2581 = vpop.f32.mrf.mxu0
      %v2582 = vadd.f32 0.0, %v2581
      %2583 = vmatmul.bf16.gmra.mxu0 %v1255
      %v2584 = vpop.f32.mrf.mxu0
      %v2585 = vadd.f32 0.0, %v2584
      %v2586 = vpop.f32.mrf.mxu0
      %v2587 = vadd.f32 0.0, %v2586
      %2588 = vmatmul.bf16.gmra.mxu0 %v1258
      %v2589 = vpop.f32.mrf.mxu0
      %v2590 = vadd.f32 0.0, %v2589
      %v2591 = vpop.f32.mrf.mxu0
      %v2592 = vadd.f32 0.0, %v2591
      %2593 = vmatmul.bf16.gmra.mxu0 %v1261
      %v2594 = vpop.f32.mrf.mxu0
      %v2595 = vadd.f32 0.0, %v2594
      %v2596 = vpop.f32.mrf.mxu0
      %v2597 = vadd.f32 0.0, %v2596
      %2598 = vmatmul.bf16.gmra.mxu0 %v1264
      %v2599 = vpop.f32.mrf.mxu0
      %v2600 = vadd.f32 0.0, %v2599
      %v2601 = vpop.f32.mrf.mxu0
      %v2602 = vadd.f32 0.0, %v2601
      %2603 = vmatmul.bf16.gmra.mxu0 %v1267
      %v2604 = vpop.f32.mrf.mxu0
      %v2605 = vadd.f32 0.0, %v2604
      %v2606 = vpop.f32.mrf.mxu0
      %v2607 = vadd.f32 0.0, %v2606
      %2608 = vmatmul.bf16.gmra.mxu0 %v1270
      %v2609 = vpop.f32.mrf.mxu0
      %v2610 = vadd.f32 0.0, %v2609
      %v2611 = vpop.f32.mrf.mxu0
      %v2612 = vadd.f32 0.0, %v2611
      %2613 = vmatmul.bf16.gmra.mxu0 %v1273
      %v2614 = vpop.f32.mrf.mxu0
      %v2615 = vadd.f32 0.0, %v2614
      %v2616 = vpop.f32.mrf.mxu0
      %v2617 = vadd.f32 0.0, %v2616
      %2618 = vmatmul.bf16.gmra.mxu0 %v2105
      %v2619 = vpop.f32.mrf.mxu0
      %v2620 = vadd.f32 0.0, %v2619
      %v2621 = vpop.f32.mrf.mxu0
      %v2622 = vadd.f32 0.0, %v2621
      %2623 = vmatmul.bf16.gmra.mxu0 %v2535
      %v2624 = vpop.f32.mrf.mxu0
      %v2625 = vadd.f32 0.0, %v2624
      %v2626 = vpop.f32.mrf.mxu0
      %v2627 = vadd.f32 0.0, %v2626
      %2628 = vdwg.mxu0
      %v2629 = vadd.f32 %v2473, %v2550
      %v2630 = vadd.f32 %v2474, %v2552
      %v2631 = vadd.f32 %v2475, %v2555
      %v2632 = vadd.f32 %v2476, %v2557
      %v2633 = vadd.f32 %v2477, %v2560
      %v2634 = vadd.f32 %v2478, %v2562
      %v2635 = vadd.f32 %v2479, %v2565
      %v2636 = vadd.f32 %v2480, %v2567
      %v2637 = vadd.f32 %v2481, %v2570
      %v2638 = vadd.f32 %v2482, %v2572
      %v2639 = vadd.f32 %v2483, %v2575
      %v2640 = vadd.f32 %v2484, %v2577
      %v2641 = vadd.f32 %v2485, %v2580
      %v2642 = vadd.f32 %v2486, %v2582
      %v2643 = vadd.f32 %v2487, %v2585
      %v2644 = vadd.f32 %v2488, %v2587
      %v2645 = vadd.f32 %v2489, %v2590
      %v2646 = vadd.f32 %v2490, %v2592
      %v2647 = vadd.f32 %v2491, %v2595
      %v2648 = vadd.f32 %v2492, %v2597
      %v2649 = vadd.f32 %v2493, %v2600
      %v2650 = vadd.f32 %v2494, %v2602
      %v2651 = vadd.f32 %v2495, %v2605
      %v2652 = vadd.f32 %v2496, %v2607
      %v2653 = vadd.f32 %v2497, %v2610
      %v2654 = vadd.f32 %v2498, %v2612
      %v2655 = vadd.f32 %v2499, %v2615
      %v2656 = vadd.f32 %v2500, %v2617
      %v2657 = vadd.f32 %v2501, %v2620
      %v2658 = vadd.f32 %v2502, %v2622
      %v2659 = vadd.f32 %v2503, %v2625
      %v2660 = vadd.f32 %v2504, %v2627
      %v2662 = vrot.slane %v785, 5
      %v2663 = vrot.slane %v2662, 4
      %v2664 = vrot.slane %v786, 5
      %v2665 = vsel %vm1606, %v2663, %v2664
      %v2666 = vrot.slane %v2664, 4
      %v2667 = vrot.slane %v787, 5
      %v2668 = vsel %vm1606, %v2666, %v2667
      %s2669 = scalar_lea.vmem %s1, 32
      %v2670 = vld [vmem:[%s2669] sm:$0xf]
      %v2671 = vunpack.c.l.b16 %v2665
      %v2672 = vunpack.c.l.b16 %v2668
      %v2673 = vpack.c.b16 %v2672, %v2671
      %v2675 = vsel %vm1226, %v2673, 0
      %v2678 = vsel %vm1275, %v2670, 0
      %2680 = vmatpush.bf16.msra.mxu0 0
      %2681 = vmatpush.bf16.msra.mxu0 0
      %2682 = vmatpush.bf16.msra.mxu0 0
      %2683 = vmatpush.bf16.msra.mxu0 0
      %2684 = vmatpush.bf16.msra.mxu0 0
      %2685 = vmatpush.bf16.msra.mxu0 0
      %2686 = vmatpush.bf16.msra.mxu0 0
      %2687 = vmatpush.bf16.msra.mxu0 %v2678
      %2688 = vmatmul.bf16.gmra.mxu0 %v1776
      %v2689 = vpop.f32.mrf.mxu0
      %v2690 = vadd.f32 0.0, %v2689
      %v2691 = vpop.f32.mrf.mxu0
      %v2692 = vadd.f32 0.0, %v2691
      %2693 = vmatmul.bf16.gmra.mxu0 %v1779
      %v2694 = vpop.f32.mrf.mxu0
      %v2695 = vadd.f32 0.0, %v2694
      %v2696 = vpop.f32.mrf.mxu0
      %v2697 = vadd.f32 0.0, %v2696
      %2698 = vmatmul.bf16.gmra.mxu0 %v1782
      %v2699 = vpop.f32.mrf.mxu0
      %v2700 = vadd.f32 0.0, %v2699
      %v2701 = vpop.f32.mrf.mxu0
      %v2702 = vadd.f32 0.0, %v2701
      %2703 = vmatmul.bf16.gmra.mxu0 %v1785
      %v2704 = vpop.f32.mrf.mxu0
      %v2705 = vadd.f32 0.0, %v2704
      %v2706 = vpop.f32.mrf.mxu0
      %v2707 = vadd.f32 0.0, %v2706
      %2708 = vmatmul.bf16.gmra.mxu0 %v1788
      %v2709 = vpop.f32.mrf.mxu0
      %v2710 = vadd.f32 0.0, %v2709
      %v2711 = vpop.f32.mrf.mxu0
      %v2712 = vadd.f32 0.0, %v2711
      %2713 = vmatmul.bf16.gmra.mxu0 %v1791
      %v2714 = vpop.f32.mrf.mxu0
      %v2715 = vadd.f32 0.0, %v2714
      %v2716 = vpop.f32.mrf.mxu0
      %v2717 = vadd.f32 0.0, %v2716
      %2718 = vmatmul.bf16.gmra.mxu0 %v1794
      %v2719 = vpop.f32.mrf.mxu0
      %v2720 = vadd.f32 0.0, %v2719
      %v2721 = vpop.f32.mrf.mxu0
      %v2722 = vadd.f32 0.0, %v2721
      %2723 = vmatmul.bf16.gmra.mxu0 %v1797
      %v2724 = vpop.f32.mrf.mxu0
      %v2725 = vadd.f32 0.0, %v2724
      %v2726 = vpop.f32.mrf.mxu0
      %v2727 = vadd.f32 0.0, %v2726
      %2728 = vmatmul.bf16.gmra.mxu0 %v1800
      %v2729 = vpop.f32.mrf.mxu0
      %v2730 = vadd.f32 0.0, %v2729
      %v2731 = vpop.f32.mrf.mxu0
      %v2732 = vadd.f32 0.0, %v2731
      %2733 = vmatmul.bf16.gmra.mxu0 %v1803
      %v2734 = vpop.f32.mrf.mxu0
      %v2735 = vadd.f32 0.0, %v2734
      %v2736 = vpop.f32.mrf.mxu0
      %v2737 = vadd.f32 0.0, %v2736
      %2738 = vmatmul.bf16.gmra.mxu0 %v1806
      %v2739 = vpop.f32.mrf.mxu0
      %v2740 = vadd.f32 0.0, %v2739
      %v2741 = vpop.f32.mrf.mxu0
      %v2742 = vadd.f32 0.0, %v2741
      %2743 = vmatmul.bf16.gmra.mxu0 %v1809
      %v2744 = vpop.f32.mrf.mxu0
      %v2745 = vadd.f32 0.0, %v2744
      %v2746 = vpop.f32.mrf.mxu0
      %v2747 = vadd.f32 0.0, %v2746
      %2748 = vmatmul.bf16.gmra.mxu0 %v1812
      %v2749 = vpop.f32.mrf.mxu0
      %v2750 = vadd.f32 0.0, %v2749
      %v2751 = vpop.f32.mrf.mxu0
      %v2752 = vadd.f32 0.0, %v2751
      %2753 = vmatmul.bf16.gmra.mxu0 %v1815
      %v2754 = vpop.f32.mrf.mxu0
      %v2755 = vadd.f32 0.0, %v2754
      %v2756 = vpop.f32.mrf.mxu0
      %v2757 = vadd.f32 0.0, %v2756
      %2758 = vmatmul.bf16.gmra.mxu0 %v2245
      %v2759 = vpop.f32.mrf.mxu0
      %v2760 = vadd.f32 0.0, %v2759
      %v2761 = vpop.f32.mrf.mxu0
      %v2762 = vadd.f32 0.0, %v2761
      %2763 = vmatmul.bf16.gmra.mxu0 %v2675
      %v2764 = vpop.f32.mrf.mxu0
      %v2765 = vadd.f32 0.0, %v2764
      %v2766 = vpop.f32.mrf.mxu0
      %v2767 = vadd.f32 0.0, %v2766
      %2768 = vdwg.mxu0
      %v2769 = vadd.f32 %v2629, %v2690
      %v2770 = vadd.f32 %v2630, %v2692
      %v2771 = vadd.f32 %v2631, %v2695
      %v2772 = vadd.f32 %v2632, %v2697
      %v2773 = vadd.f32 %v2633, %v2700
      %v2774 = vadd.f32 %v2634, %v2702
      %v2775 = vadd.f32 %v2635, %v2705
      %v2776 = vadd.f32 %v2636, %v2707
      %v2777 = vadd.f32 %v2637, %v2710
      %v2778 = vadd.f32 %v2638, %v2712
      %v2779 = vadd.f32 %v2639, %v2715
      %v2780 = vadd.f32 %v2640, %v2717
      %v2781 = vadd.f32 %v2641, %v2720
      %v2782 = vadd.f32 %v2642, %v2722
      %v2783 = vadd.f32 %v2643, %v2725
      %v2784 = vadd.f32 %v2644, %v2727
      %v2785 = vadd.f32 %v2645, %v2730
      %v2786 = vadd.f32 %v2646, %v2732
      %v2787 = vadd.f32 %v2647, %v2735
      %v2788 = vadd.f32 %v2648, %v2737
      %v2789 = vadd.f32 %v2649, %v2740
      %v2790 = vadd.f32 %v2650, %v2742
      %v2791 = vadd.f32 %v2651, %v2745
      %v2792 = vadd.f32 %v2652, %v2747
      %v2793 = vadd.f32 %v2653, %v2750
      %v2794 = vadd.f32 %v2654, %v2752
      %v2795 = vadd.f32 %v2655, %v2755
      %v2796 = vadd.f32 %v2656, %v2757
      %v2797 = vadd.f32 %v2657, %v2760
      %v2798 = vadd.f32 %v2658, %v2762
      %v2799 = vadd.f32 %v2659, %v2765
      %v2800 = vadd.f32 %v2660, %v2767
      %v2801 = vld [vmem:[%s2] sm:$0x1]
      %v2803 = vperm.slane %v2801, 0
      %v2805 = vadd.f32 %v2769, %v2803
      %v2806 = vadd.f32 %v2770, %v2803
      %v2807 = vadd.f32 %v2771, %v2803
      %v2808 = vadd.f32 %v2772, %v2803
      %v2809 = vadd.f32 %v2773, %v2803
      %v2810 = vadd.f32 %v2774, %v2803
      %v2811 = vadd.f32 %v2775, %v2803
      %v2812 = vadd.f32 %v2776, %v2803
      %v2813 = vadd.f32 %v2777, %v2803
      %v2814 = vadd.f32 %v2778, %v2803
      %v2815 = vadd.f32 %v2779, %v2803
      %v2816 = vadd.f32 %v2780, %v2803
      %v2817 = vadd.f32 %v2781, %v2803
      %v2818 = vadd.f32 %v2782, %v2803
      %v2819 = vadd.f32 %v2783, %v2803
      %v2820 = vadd.f32 %v2784, %v2803
      %v2821 = vadd.f32 %v2785, %v2803
      %v2822 = vadd.f32 %v2786, %v2803
      %v2823 = vadd.f32 %v2787, %v2803
      %v2824 = vadd.f32 %v2788, %v2803
      %v2825 = vadd.f32 %v2789, %v2803
      %v2826 = vadd.f32 %v2790, %v2803
      %v2827 = vadd.f32 %v2791, %v2803
      %v2828 = vadd.f32 %v2792, %v2803
      %v2829 = vadd.f32 %v2793, %v2803
      %v2830 = vadd.f32 %v2794, %v2803
      %v2831 = vadd.f32 %v2795, %v2803
      %v2832 = vadd.f32 %v2796, %v2803
      %v2833 = vadd.f32 %v2797, %v2803
      %v2834 = vadd.f32 %v2798, %v2803
      %v2835 = vadd.f32 %v2799, %v2803
      %v2836 = vadd.f32 %v2800, %v2803
      %v2837 = vmax.f32 %v2805, 0.0
      %v2838 = vmax.f32 %v2806, 0.0
      %v2839 = vmax.f32 %v2807, 0.0
      %v2840 = vmax.f32 %v2808, 0.0
      %v2841 = vmax.f32 %v2809, 0.0
      %v2842 = vmax.f32 %v2810, 0.0
      %v2843 = vmax.f32 %v2811, 0.0
      %v2844 = vmax.f32 %v2812, 0.0
      %v2845 = vmax.f32 %v2813, 0.0
      %v2846 = vmax.f32 %v2814, 0.0
      %v2847 = vmax.f32 %v2815, 0.0
      %v2848 = vmax.f32 %v2816, 0.0
      %v2849 = vmax.f32 %v2817, 0.0
      %v2850 = vmax.f32 %v2818, 0.0
      %v2851 = vmax.f32 %v2819, 0.0
      %v2852 = vmax.f32 %v2820, 0.0
      %v2853 = vmax.f32 %v2821, 0.0
      %v2854 = vmax.f32 %v2822, 0.0
      %v2855 = vmax.f32 %v2823, 0.0
      %v2856 = vmax.f32 %v2824, 0.0
      %v2857 = vmax.f32 %v2825, 0.0
      %v2858 = vmax.f32 %v2826, 0.0
      %v2859 = vmax.f32 %v2827, 0.0
      %v2860 = vmax.f32 %v2828, 0.0
      %v2861 = vmax.f32 %v2829, 0.0
      %v2862 = vmax.f32 %v2830, 0.0
      %v2863 = vmax.f32 %v2831, 0.0
      %v2864 = vmax.f32 %v2832, 0.0
      %v2865 = vmax.f32 %v2833, 0.0
      %v2866 = vmax.f32 %v2834, 0.0
      %v2867 = vmax.f32 %v2835, 0.0
      %v2868 = vmax.f32 %v2836, 0.0
      %v2869 = vpack.c.bf16 %v2837, %v2837
      %v2870 = vpack.c.bf16 %v2838, %v2838
      %v2871 = vpack.c.bf16 %v2839, %v2839
      %v2872 = vpack.c.bf16 %v2840, %v2840
      %v2873 = vpack.c.bf16 %v2841, %v2841
      %v2874 = vpack.c.bf16 %v2842, %v2842
      %v2875 = vpack.c.bf16 %v2843, %v2843
      %v2876 = vpack.c.bf16 %v2844, %v2844
      %v2877 = vpack.c.bf16 %v2845, %v2845
      %v2878 = vpack.c.bf16 %v2846, %v2846
      %v2879 = vpack.c.bf16 %v2847, %v2847
      %v2880 = vpack.c.bf16 %v2848, %v2848
      %v2881 = vpack.c.bf16 %v2849, %v2849
      %v2882 = vpack.c.bf16 %v2850, %v2850
      %v2883 = vpack.c.bf16 %v2851, %v2851
      %v2884 = vpack.c.bf16 %v2852, %v2852
      %v2885 = vpack.c.bf16 %v2853, %v2853
      %v2886 = vpack.c.bf16 %v2854, %v2854
      %v2887 = vpack.c.bf16 %v2855, %v2855
      %v2888 = vpack.c.bf16 %v2856, %v2856
      %v2889 = vpack.c.bf16 %v2857, %v2857
      %v2890 = vpack.c.bf16 %v2858, %v2858
      %v2891 = vpack.c.bf16 %v2859, %v2859
      %v2892 = vpack.c.bf16 %v2860, %v2860
      %v2893 = vpack.c.bf16 %v2861, %v2861
      %v2894 = vpack.c.bf16 %v2862, %v2862
      %v2895 = vpack.c.bf16 %v2863, %v2863
      %v2896 = vpack.c.bf16 %v2864, %v2864
      %v2897 = vpack.c.bf16 %v2865, %v2865
      %v2898 = vpack.c.bf16 %v2866, %v2866
      %v2899 = vpack.c.bf16 %v2867, %v2867
      %v2900 = vpack.c.bf16 %v2868, %v2868
      %vm2901 = vcmask 60416
      %2902 = vst.msk [vmem:[%s194] sm:$0xf] %vm2901, %v2869
      %2903 = vst.msk [vmem:[%s194 + $0x4] sm:$0xf] %vm2901, %v2870
      %2904 = vst.msk [vmem:[%s194 + $0x8] sm:$0xf] %vm2901, %v2871
      %2905 = vst.msk [vmem:[%s194 + $0xc] sm:$0xf] %vm2901, %v2872
      %2906 = vst.msk [vmem:[%s194 + $0x10] sm:$0xf] %vm2901, %v2873
      %2907 = vst.msk [vmem:[%s194 + $0x14] sm:$0xf] %vm2901, %v2874
      %2908 = vst.msk [vmem:[%s194 + $0x18] sm:$0xf] %vm2901, %v2875
      %2909 = vst.msk [vmem:[%s194 + $0x1c] sm:$0xf] %vm2901, %v2876
      %2910 = vst.msk [vmem:[%s194 + $0x20] sm:$0xf] %vm2901, %v2877
      %2911 = vst.msk [vmem:[%s194 + $0x24] sm:$0xf] %vm2901, %v2878
      %2912 = vst.msk [vmem:[%s194 + $0x28] sm:$0xf] %vm2901, %v2879
      %2913 = vst.msk [vmem:[%s194 + $0x2c] sm:$0xf] %vm2901, %v2880
      %2914 = vst.msk [vmem:[%s194 + $0x30] sm:$0xf] %vm2901, %v2881
      %2915 = vst.msk [vmem:[%s194 + $0x34] sm:$0xf] %vm2901, %v2882
      %2916 = vst.msk [vmem:[%s194 + $0x38] sm:$0xf] %vm2901, %v2883
      %2917 = vst.msk [vmem:[%s194 + $0x3c] sm:$0xf] %vm2901, %v2884
      %2918 = vst.msk [vmem:[%s194 + $0x40] sm:$0xf] %vm2901, %v2885
      %2919 = vst.msk [vmem:[%s194 + $0x44] sm:$0xf] %vm2901, %v2886
      %2920 = vst.msk [vmem:[%s194 + $0x48] sm:$0xf] %vm2901, %v2887
      %2921 = vst.msk [vmem:[%s194 + $0x4c] sm:$0xf] %vm2901, %v2888
      %2922 = vst.msk [vmem:[%s194 + $0x50] sm:$0xf] %vm2901, %v2889
      %2923 = vst.msk [vmem:[%s194 + $0x54] sm:$0xf] %vm2901, %v2890
      %2924 = vst.msk [vmem:[%s194 + $0x58] sm:$0xf] %vm2901, %v2891
      %2925 = vst.msk [vmem:[%s194 + $0x5c] sm:$0xf] %vm2901, %v2892
      %2926 = vst.msk [vmem:[%s194 + $0x60] sm:$0xf] %vm2901, %v2893
      %2927 = vst.msk [vmem:[%s194 + $0x64] sm:$0xf] %vm2901, %v2894
      %2928 = vst.msk [vmem:[%s194 + $0x68] sm:$0xf] %vm2901, %v2895
      %2929 = vst.msk [vmem:[%s194 + $0x6c] sm:$0xf] %vm2901, %v2896
      %2930 = vst.msk [vmem:[%s194 + $0x70] sm:$0xf] %vm2901, %v2897
      %2931 = vst.msk [vmem:[%s194 + $0x74] sm:$0xf] %vm2901, %v2898
      %2932 = vst.msk [vmem:[%s194 + $0x78] sm:$0xf] %vm2901, %v2899
      %2933 = vst.msk [vmem:[%s194 + $0x7c] sm:$0xf] %vm2901, %v2900
      %s2934 = smul.u32 16, %s19
      %p2935 = scmp.lt.s32.totalorder %s18, 1
      %s2936 = scalar_select %p2935, %s18, 1
      %p2937 = scmp.lt.s32.totalorder %s2934, 15
      %s2938 = scalar_select %p2937, %s2934, 15
      %s2939 = smul.addr %s2938, 2
      %s2940 = smul.addr %s2936, 32
      %s2941 = sadd.s32 %s2939, %s2940
      %s2942 = smul.addr %s2941, 4
      %s2943 = scalar_lea.vmem %s3, %s2942
      // Predicated region
      $region37: #{tpu_custom_call.1} parent=31 // pred_check
        %p2944 = pneg %p114
      $region38: #{tpu_custom_call.1} parent=31 // pred_check_branch
        %2946 = sbr.rel (%p2944) target = $region40
      $region39: #{tpu_custom_call.1} parent=31 // pred_region
        %s2947 = smul.u32 16, %s19
      $region40: #{tpu_custom_call.1} parent=31 // pred_fallthru
        _
    $region32: #{tpu_custom_call.1} parent=5 // pred_fallthru
      _
    %p2948 = scmp.le.s32.totalorder 2, %s9
    // Predicated region
    $region41: #{tpu_custom_call.1} parent=5 // pred_check
      %p2949 = pneg %p2948
    $region42: #{tpu_custom_call.1} parent=5 // pred_check_branch
      %2951 = sbr.rel (%p2949) target = $region44
    $region43: #{tpu_custom_call.1} parent=5 // pred_region
      %s2952 = ssub.s32 %s9, 2
      // Predicated region
      $region45: #{tpu_custom_call.1} parent=43 // pred_check
        %p2953 = pneg %p120
      $region46: #{tpu_custom_call.1} parent=43 // pred_check_branch
        %2955 = sbr.rel (%p2953) target = $region48
      $region47: #{tpu_custom_call.1} parent=43 // pred_region
        %s2956 = smul.u32 16, %s21
        %p2957 = scmp.lt.s32.totalorder %s20, 1
        %s2958 = scalar_select %p2957, %s20, 1
        %p2959 = scmp.lt.s32.totalorder %s2956, 15
        %s2960 = scalar_select %p2959, %s2956, 15
        %s2961 = smul.addr %s2960, 2
        %s2962 = smul.addr %s2958, 32
        %s2963 = sadd.s32 %s2961, %s2962
        %s2964 = smul.addr %s2963, 4
        %s2965 = scalar_lea.vmem %s3, %s2964
      $region48: #{tpu_custom_call.1} parent=43 // pred_fallthru
        _
    $region44: #{tpu_custom_call.1} parent=5 // pred_fallthru
      _
  $region6: #{tpu_custom_call.1} parent=0 // loop_footer
    %s13 = sadd.s32 1, %s9
  $region7: #{tpu_custom_call.1} parent=0 // loop_footer_branch
    %8 = sbr.rel target = $region3
  $region8: #{tpu_custom_call.1} parent=0 // loop_exit
    _

</llo_original>
